<compile_context>
chip_gen: v5e
topology: v5e:2x2
jax: 0.10.0
libtpu: 0.0.40
codegen_flags: <defaults>
</compile_context>

<pallas_src>
import random
import numpy as np
import jax
import jax.numpy as jnp
from jax.experimental import pallas as pl
from jax.experimental.pallas import tpu as pltpu

GROUPS = [21, 6, 17, 14, 20]
TOTAL = sum(GROUPS)          # 78 graph nodes
AE_OUT = 20                  # vision_autoencoder output width
N_CLI = TOTAL - AE_OUT       # 58 clinical features
RADIO_DIM = 384
HEADS1 = 4                   # conv1 heads (out_channels per head = 1)
RATIO = 0.2
LN_EPS = 1e-5
LEAKY_SLOPE = 0.01
NEG_BIG = 1e30


# ---------------------------------------------------------------------------
# Graph construction (replicates Graph_test 'random' mode; host-side glue).
# ---------------------------------------------------------------------------
def build_edge_mask(seed=0):
    """mask[dst, src] = 1  iff  edge (src -> dst) exists (PyG source_to_target)."""
    rng = random.Random(seed)
    edges = []
    offset = 0
    for num in GROUPS:
        for i in range(num):
            for j in range(num):
                if i + offset != j + offset:
                    edges.append((i + offset, j + offset))
        offset += num
    offset = 0
    for i in range(5):
        offset_2 = GROUPS[i]          # replicates the original code exactly
        for j in range(i + 1, 5):
            for _i in range(GROUPS[i]):
                for _j in range(GROUPS[j]):
                    if _i + offset != _j + offset_2 and rng.random() < RATIO:
                        edges.append((_i + offset, _j + offset_2))
            offset_2 += GROUPS[j]
        offset += GROUPS[i]
    mask = np.zeros((TOTAL, TOTAL), dtype=np.float32)
    for src, dst in edges:
        mask[dst, src] = 1.0
    return jnp.asarray(mask)


# ---------------------------------------------------------------------------
# The Pallas kernel: whole forward pass.
# ---------------------------------------------------------------------------
def graph_test_kernel(vec_ref, wae_ref, msk_ref, sc_ref, out_ref):
    slope = jnp.float32(LEAKY_SLOPE)

    def lrelu(v):
        return jnp.where(v > 0, v, slope * v)

    # ---- unpack slabs (all static, tile-aligned slices) ----
    radio = vec_ref[0:1, :]                      # [1, 384]
    ln1g = vec_ref[1:2, :]
    ln1b = vec_ref[2:3, :]
    cli = vec_ref[3:4, 0:TOTAL]                  # [1, 78] (lanes 58..77 are zero)
    bae = vec_ref[4:5, 0:TOTAL]                  # [1, 78] (b_ae at lanes 58..77)
    ln2g = vec_ref[5:6, 0:TOTAL]
    ln2b = vec_ref[6:7, 0:TOTAL]
    bcls = vec_ref[7:8, 0:2]                     # [1, 2]

    bias = msk_ref[:, 0:TOTAL]                   # [78, 78] additive mask: 0 / -1e30
    biasT = msk_ref[:, 128:128 + TOTAL]          # [78, 78] transposed additive mask
    eye = msk_ref[:, 256:256 + TOTAL]            # [78, 78] identity (relayout helper)
    wcls = msk_ref[:, 384:386]                   # [78, 2]  W_cls^T

    # ---- vision_autoencoder: LayerNorm(384) -> Linear(384,20) -> LeakyReLU ----
    mu = jnp.mean(radio, axis=1, keepdims=True)
    var = jnp.mean((radio - mu) ** 2, axis=1, keepdims=True)
    rn = (radio - mu) * jax.lax.rsqrt(var + LN_EPS) * ln1g + ln1b      # [1, 384]
    h = jnp.dot(rn, wae_ref[...], preferred_element_type=jnp.float32) + bae
    h = lrelu(h)                        # lanes 0..57 stay exactly 0
    # Dropout(p=0.2): eval-mode identity.

    # concat([cli_data, radio_hidden], dim=1).view(-1, 1)
    x_row = cli + h                                              # [1, 78]
    x_col = jnp.sum(eye * x_row, axis=1, keepdims=True)          # [78, 1]

    # ---- conv1: TransformerConv(1 -> 1, heads=4, concat=True) ----
    # scores[i, j] = q[i]*k[j] + bias[i, j]  (target i on sublanes, source j on lanes)
    x2 = []
    for hd in range(HEADS1):
        wq = sc_ref[0 + hd]
        bq = sc_ref[4 + hd]
        wk = sc_ref[8 + hd]
        bk = sc_ref[12 + hd]
        wv = sc_ref[16 + hd]
        bv = sc_ref[20 + hd]
        ws = sc_ref[24 + hd]
        bs = sc_ref[28 + hd]
        q = wq * x_col + bq                                      # [78, 1]
        k = wk * x_row + bk                                      # [1, 78]
        v = wv * x_row + bv                                      # [1, 78]
        s = q * k + bias                                         # [78, 78] (head dim=1 -> scale 1)
        m = jnp.max(s, axis=1, keepdims=True)
        e = jnp.exp(s - m)                                       # masked entries underflow to 0
        l = jnp.sum(e, axis=1, keepdims=True)                    # >= 1 (every node has in-edges)
        alpha = e * pl.reciprocal(l, approx=True)
        agg = jnp.sum(alpha * v, axis=1, keepdims=True)          # [78, 1]
        # conv1 output (agg + root/skip), then model-level F.leaky_relu (elementwise)
        x2.append(lrelu(agg + (ws * x_col + bs)))

    # ---- conv2: TransformerConv(4 -> 1, heads=1, concat=True) ----
    bq2 = sc_ref[48]
    bk2 = sc_ref[49]
    bv2 = sc_ref[50]
    bs2 = sc_ref[51]
    q2c = sc_ref[32] * x2[0] + sc_ref[33] * x2[1] + sc_ref[34] * x2[2] + sc_ref[35] * x2[3] + bq2
    k2c = sc_ref[36] * x2[0] + sc_ref[37] * x2[1] + sc_ref[38] * x2[2] + sc_ref[39] * x2[3] + bk2
    v2c = sc_ref[40] * x2[0] + sc_ref[41] * x2[1] + sc_ref[42] * x2[2] + sc_ref[43] * x2[3] + bv2
    s2c = sc_ref[44] * x2[0] + sc_ref[45] * x2[1] + sc_ref[46] * x2[2] + sc_ref[47] * x2[3] + bs2

    q2_row = jnp.sum(eye * q2c, axis=0, keepdims=True)           # [1, 78]
    s2_row = jnp.sum(eye * s2c, axis=0, keepdims=True)           # [1, 78]

    # transposed orientation: source j on sublanes, target i on lanes
    sT = k2c * q2_row + biasT                                    # [78, 78]
    m2 = jnp.max(sT, axis=0, keepdims=True)                      # [1, 78]
    e2 = jnp.exp(sT - m2)
    l2 = jnp.sum(e2, axis=0, keepdims=True)
    a2 = e2 * pl.reciprocal(l2, approx=True)
    o2 = jnp.sum(a2 * v2c, axis=0, keepdims=True)                # [1, 78]
    x3 = lrelu(o2 + s2_row)                                      # [1, 78]  (already "permuted")

    # ---- classifier: LayerNorm(78) -> Linear(78, 2) ----
    mu2 = jnp.mean(x3, axis=1, keepdims=True)
    var2 = jnp.mean((x3 - mu2) ** 2, axis=1, keepdims=True)
    xn = (x3 - mu2) * jax.lax.rsqrt(var2 + LN_EPS) * ln2g + ln2b
    out_ref[...] = (jnp.dot(xn, wcls, preferred_element_type=jnp.float32) + bcls)


# ---------------------------------------------------------------------------
# Parameter init (deterministic, mirrors the layer shapes in __init__).
# ---------------------------------------------------------------------------
def init_params(key):
    ks = jax.random.split(key, 16)

    def xavier(k, out_dim, in_dim):
        bound = float(np.sqrt(6.0 / (in_dim + out_dim)))
        return jax.random.uniform(k, (out_dim, in_dim), jnp.float32, -bound, bound)

    def unif(k, shape, b=0.1):
        return jax.random.uniform(k, shape, jnp.float32, -b, b)

    p = {}
    p["ln1_g"] = jnp.ones((RADIO_DIM,), jnp.float32)
    p["ln1_b"] = jnp.zeros((RADIO_DIM,), jnp.float32)
    p["w_ae"] = xavier(ks[0], AE_OUT, RADIO_DIM)        # Linear(384, 20) weight [20,384]
    p["b_ae"] = jnp.zeros((AE_OUT,), jnp.float32)
    # conv1 = TransformerConv(1, 1, heads=4): lin_{query,key,value,skip}: Linear(1, 4)
    p["c1_wq"] = xavier(ks[1], HEADS1, 1)
    p["c1_wk"] = xavier(ks[2], HEADS1, 1)
    p["c1_wv"] = xavier(ks[3], HEADS1, 1)
    p["c1_ws"] = xavier(ks[4], HEADS1, 1)
    p["c1_bq"] = unif(ks[5], (HEADS1,))
    p["c1_bk"] = unif(ks[6], (HEADS1,))
    p["c1_bv"] = unif(ks[7], (HEADS1,))
    p["c1_bs"] = jnp.zeros((HEADS1,), jnp.float32)
    # conv2 = TransformerConv(4, 1, heads=1): lin_{query,key,value,skip}: Linear(4, 1)
    p["c2_wq"] = xavier(ks[8], 1, HEADS1)
    p["c2_wk"] = xavier(ks[9], 1, HEADS1)
    p["c2_wv"] = xavier(ks[10], 1, HEADS1)
    p["c2_ws"] = xavier(ks[11], 1, HEADS1)
    p["c2_bq"] = jnp.zeros((1,), jnp.float32)
    p["c2_bk"] = jnp.zeros((1,), jnp.float32)
    p["c2_bv"] = jnp.zeros((1,), jnp.float32)
    p["c2_bs"] = jnp.zeros((1,), jnp.float32)
    p["ln2_g"] = jnp.ones((TOTAL,), jnp.float32)
    p["ln2_b"] = jnp.zeros((TOTAL,), jnp.float32)
    p["w_cls"] = xavier(ks[12], 2, TOTAL)               # Linear(78, 2) weight [2,78]
    p["b_cls"] = jnp.zeros((2,), jnp.float32)
    return p


# ---------------------------------------------------------------------------
# Wrapper: host-side packing into 4 lane-dense slabs + pallas_call.
# ---------------------------------------------------------------------------
def graph_test_forward(params, cli_data, radio_data, mask):
    f32 = jnp.float32

    # --- vec slab [8, 384] ---
    vec = jnp.zeros((8, RADIO_DIM), f32)
    vec = vec.at[0, :].set(radio_data.astype(f32)[0])
    vec = vec.at[1, :].set(params["ln1_g"])
    vec = vec.at[2, :].set(params["ln1_b"])
    vec = vec.at[3, :N_CLI].set(cli_data.astype(f32)[0])
    vec = vec.at[4, N_CLI:TOTAL].set(params["b_ae"])
    vec = vec.at[5, :TOTAL].set(params["ln2_g"])
    vec = vec.at[6, :TOTAL].set(params["ln2_b"])
    vec = vec.at[7, :2].set(params["b_cls"])

    # --- AE weight slab [384, 78] (W_ae^T in cols 58..77) ---
    wae = jnp.zeros((RADIO_DIM, TOTAL), f32).at[:, N_CLI:].set(params["w_ae"].T)

    # --- mask / identity / classifier slab [78, 386] (128-lane aligned blocks) ---
    mask_f = mask.astype(f32)
    add_bias = (mask_f - 1.0) * NEG_BIG              # 0 where edge, -1e30 where not
    eye = jnp.eye(TOTAL, dtype=f32)
    msk = jnp.zeros((TOTAL, 386), f32)
    msk = msk.at[:, 0:TOTAL].set(add_bias)
    msk = msk.at[:, 128:128 + TOTAL].set(add_bias.T)
    msk = msk.at[:, 256:256 + TOTAL].set(eye)
    msk = msk.at[:, 384:386].set(params["w_cls"].T)  # [78, 2]

    # --- SMEM scalar slab [64] ---
    sc = jnp.zeros((64,), f32)
    sc = sc.at[0:4].set(params["c1_wq"].reshape(-1))
    sc = sc.at[4:8].set(params["c1_bq"])
    sc = sc.at[8:12].set(params["c1_wk"].reshape(-1))
    sc = sc.at[12:16].set(params["c1_bk"])
    sc = sc.at[16:20].set(params["c1_wv"].reshape(-1))
    sc = sc.at[20:24].set(params["c1_bv"])
    sc = sc.at[24:28].set(params["c1_ws"].reshape(-1))
    sc = sc.at[28:32].set(params["c1_bs"])
    sc = sc.at[32:36].set(params["c2_wq"].reshape(-1))
    sc = sc.at[36:40].set(params["c2_wk"].reshape(-1))
    sc = sc.at[40:44].set(params["c2_wv"].reshape(-1))
    sc = sc.at[44:48].set(params["c2_ws"].reshape(-1))
    sc = sc.at[48].set(params["c2_bq"][0])
    sc = sc.at[49].set(params["c2_bk"][0])
    sc = sc.at[50].set(params["c2_bv"][0])
    sc = sc.at[51].set(params["c2_bs"][0])

    vmem = pltpu.MemorySpace.VMEM
    smem = pltpu.MemorySpace.SMEM
    return pl.pallas_call(
        graph_test_kernel,
        out_shape=jax.ShapeDtypeStruct((1, 2), jnp.float32),
        in_specs=[
            pl.BlockSpec(memory_space=vmem),   # vec slab
            pl.BlockSpec(memory_space=vmem),   # wae slab
            pl.BlockSpec(memory_space=vmem),   # mask slab
            pl.BlockSpec(memory_space=smem),   # scalar slab
        ],
        out_specs=pl.BlockSpec(memory_space=vmem),
    )(vec, wae, msk, sc)


if __name__ == "__main__":
    key = jax.random.PRNGKey(0)
    k_params, k_cli, k_radio = jax.random.split(key, 3)
    params = init_params(k_params)
    # batch must be 1 (classifier LayerNorm(78) over the flattened node axis)
    cli_data = jax.random.normal(k_cli, (1, N_CLI), jnp.float32)          # [1, 58]
    radio_data = jax.random.normal(k_radio, (1, RADIO_DIM), jnp.float32)  # [1, 384]
    mask = build_edge_mask(seed=0)

    fwd = jax.jit(graph_test_forward)
    out = fwd(params, cli_data, radio_data, mask)
    out = jax.block_until_ready(out)
    assert out.shape == (1, 2) and bool(jnp.all(jnp.isfinite(out)))
    print("KERNEL_OK")
</pallas_src>

<mosaic_0001>
module attributes {stable_mosaic.version = 11 : i64} {
  func.func @graph_test_kernel(%arg0: memref<8x384xf32, #tpu.memory_space<vmem>>, %arg1: memref<384x78xf32, #tpu.memory_space<vmem>>, %arg2: memref<78x386xf32, #tpu.memory_space<vmem>>, %arg3: memref<64xf32, #tpu.memory_space<smem>>, %arg4: memref<1x2xf32, #tpu.memory_space<vmem>>) attributes {dimension_semantics = [], scalar_prefetch = 0 : i64, scratch_operands = 0 : i64, tpu.core_type = #tpu.core_type<tc>} {
    %c0 = arith.constant 0 : index
    %c0_0 = arith.constant 0 : index
    %0 = vector.load %arg0[%c0, %c0_0] : memref<8x384xf32, #tpu.memory_space<vmem>>, vector<1x384xf32>
    %c1 = arith.constant 1 : index
    %c0_1 = arith.constant 0 : index
    %1 = vector.load %arg0[%c1, %c0_1] : memref<8x384xf32, #tpu.memory_space<vmem>>, vector<1x384xf32>
    %c2 = arith.constant 2 : index
    %c0_2 = arith.constant 0 : index
    %2 = vector.load %arg0[%c2, %c0_2] : memref<8x384xf32, #tpu.memory_space<vmem>>, vector<1x384xf32>
    %c3 = arith.constant 3 : index
    %c0_3 = arith.constant 0 : index
    %3 = vector.load %arg0[%c3, %c0_3] : memref<8x384xf32, #tpu.memory_space<vmem>>, vector<1x78xf32>
    %c4 = arith.constant 4 : index
    %c0_4 = arith.constant 0 : index
    %4 = vector.load %arg0[%c4, %c0_4] : memref<8x384xf32, #tpu.memory_space<vmem>>, vector<1x78xf32>
    %c5 = arith.constant 5 : index
    %c0_5 = arith.constant 0 : index
    %5 = vector.load %arg0[%c5, %c0_5] : memref<8x384xf32, #tpu.memory_space<vmem>>, vector<1x78xf32>
    %c6 = arith.constant 6 : index
    %c0_6 = arith.constant 0 : index
    %6 = vector.load %arg0[%c6, %c0_6] : memref<8x384xf32, #tpu.memory_space<vmem>>, vector<1x78xf32>
    %c7 = arith.constant 7 : index
    %c0_7 = arith.constant 0 : index
    %7 = vector.load %arg0[%c7, %c0_7] : memref<8x384xf32, #tpu.memory_space<vmem>>, vector<1x2xf32>
    %c0_8 = arith.constant 0 : index
    %c0_9 = arith.constant 0 : index
    %8 = vector.load %arg2[%c0_8, %c0_9] : memref<78x386xf32, #tpu.memory_space<vmem>>, vector<78x78xf32>
    %c0_10 = arith.constant 0 : index
    %c128 = arith.constant 128 : index
    %9 = vector.load %arg2[%c0_10, %c128] : memref<78x386xf32, #tpu.memory_space<vmem>>, vector<78x78xf32>
    %c0_11 = arith.constant 0 : index
    %c256 = arith.constant 256 : index
    %10 = vector.load %arg2[%c0_11, %c256] : memref<78x386xf32, #tpu.memory_space<vmem>>, vector<78x78xf32>
    %c0_12 = arith.constant 0 : index
    %c384 = arith.constant 384 : index
    %11 = vector.load %arg2[%c0_12, %c384] : memref<78x386xf32, #tpu.memory_space<vmem>>, vector<78x2xf32>
    %cst = arith.constant dense<0.000000e+00> : vector<1xf32>
    %12 = vector.multi_reduction <add>, %0, %cst [1] : vector<1x384xf32> to vector<1xf32>
    %13 = vector.shape_cast %12 : vector<1xf32> to vector<1x1xf32>
    %cst_13 = arith.constant 3.840000e+02 : f32
    %14 = vector.broadcast %cst_13 : f32 to vector<1x1xf32>
    %15 = arith.divf %13, %14 : vector<1x1xf32>
    %16 = vector.broadcast %15 : vector<1x1xf32> to vector<1x384xf32>
    %17 = arith.subf %0, %16 : vector<1x384xf32>
    %18 = arith.mulf %17, %17 : vector<1x384xf32>
    %cst_14 = arith.constant dense<0.000000e+00> : vector<1xf32>
    %19 = vector.multi_reduction <add>, %18, %cst_14 [1] : vector<1x384xf32> to vector<1xf32>
    %20 = vector.shape_cast %19 : vector<1xf32> to vector<1x1xf32>
    %cst_15 = arith.constant 3.840000e+02 : f32
    %21 = vector.broadcast %cst_15 : f32 to vector<1x1xf32>
    %22 = arith.divf %20, %21 : vector<1x1xf32>
    %23 = vector.broadcast %15 : vector<1x1xf32> to vector<1x384xf32>
    %24 = arith.subf %0, %23 : vector<1x384xf32>
    %cst_16 = arith.constant 9.99999974E-6 : f32
    %25 = vector.broadcast %cst_16 : f32 to vector<1x1xf32>
    %26 = arith.addf %22, %25 : vector<1x1xf32>
    %27 = math.rsqrt %26 : vector<1x1xf32>
    %28 = vector.broadcast %27 : vector<1x1xf32> to vector<1x384xf32>
    %29 = arith.mulf %24, %28 : vector<1x384xf32>
    %30 = arith.mulf %29, %1 : vector<1x384xf32>
    %31 = arith.addf %30, %2 : vector<1x384xf32>
    %c0_17 = arith.constant 0 : index
    %c0_18 = arith.constant 0 : index
    %32 = vector.load %arg1[%c0_17, %c0_18] : memref<384x78xf32, #tpu.memory_space<vmem>>, vector<384x78xf32>
    %cst_19 = arith.constant dense<0.000000e+00> : vector<1x78xf32>
    %33 = tpu.matmul %31, %32, %cst_19 {dimension_numbers = #tpu.dot_dimension_numbers<[1], [0], [0], [1], [0, 0, 1, 1], [], []>} : vector<1x384xf32>, vector<384x78xf32>, vector<1x78xf32> -> vector<1x78xf32>
    %34 = arith.addf %33, %4 : vector<1x78xf32>
    %cst_20 = arith.constant 0.000000e+00 : f32
    %35 = vector.broadcast %cst_20 : f32 to vector<1x78xf32>
    %36 = arith.cmpf ogt, %34, %35 : vector<1x78xf32>
    %cst_21 = arith.constant 0.00999999977 : f32
    %37 = vector.broadcast %cst_21 : f32 to vector<1x78xf32>
    %38 = arith.mulf %37, %34 : vector<1x78xf32>
    %39 = arith.select %36, %34, %38 : vector<1x78xi1>, vector<1x78xf32>
    %40 = arith.addf %3, %39 : vector<1x78xf32>
    %41 = vector.broadcast %40 : vector<1x78xf32> to vector<78x78xf32>
    %42 = arith.mulf %10, %41 : vector<78x78xf32>
    %cst_22 = arith.constant dense<0.000000e+00> : vector<78xf32>
    %43 = vector.multi_reduction <add>, %42, %cst_22 [1] : vector<78x78xf32> to vector<78xf32>
    %44 = vector.shape_cast %43 : vector<78xf32> to vector<78x1xf32>
    %c0_23 = arith.constant 0 : index
    %45 = memref.load %arg3[%c0_23] : memref<64xf32, #tpu.memory_space<smem>>
    %c4_24 = arith.constant 4 : index
    %46 = memref.load %arg3[%c4_24] : memref<64xf32, #tpu.memory_space<smem>>
    %c8 = arith.constant 8 : index
    %47 = memref.load %arg3[%c8] : memref<64xf32, #tpu.memory_space<smem>>
    %c12 = arith.constant 12 : index
    %48 = memref.load %arg3[%c12] : memref<64xf32, #tpu.memory_space<smem>>
    %c16 = arith.constant 16 : index
    %49 = memref.load %arg3[%c16] : memref<64xf32, #tpu.memory_space<smem>>
    %c20 = arith.constant 20 : index
    %50 = memref.load %arg3[%c20] : memref<64xf32, #tpu.memory_space<smem>>
    %c24 = arith.constant 24 : index
    %51 = memref.load %arg3[%c24] : memref<64xf32, #tpu.memory_space<smem>>
    %c28 = arith.constant 28 : index
    %52 = memref.load %arg3[%c28] : memref<64xf32, #tpu.memory_space<smem>>
    %53 = vector.broadcast %45 : f32 to vector<78x1xf32>
    %54 = arith.mulf %53, %44 : vector<78x1xf32>
    %55 = vector.broadcast %46 : f32 to vector<78x1xf32>
    %56 = arith.addf %54, %55 : vector<78x1xf32>
    %57 = vector.broadcast %47 : f32 to vector<1x78xf32>
    %58 = arith.mulf %57, %40 : vector<1x78xf32>
    %59 = vector.broadcast %48 : f32 to vector<1x78xf32>
    %60 = arith.addf %58, %59 : vector<1x78xf32>
    %61 = vector.broadcast %49 : f32 to vector<1x78xf32>
    %62 = arith.mulf %61, %40 : vector<1x78xf32>
    %63 = vector.broadcast %50 : f32 to vector<1x78xf32>
    %64 = arith.addf %62, %63 : vector<1x78xf32>
    %65 = vector.broadcast %56 : vector<78x1xf32> to vector<78x78xf32>
    %66 = vector.broadcast %60 : vector<1x78xf32> to vector<78x78xf32>
    %67 = arith.mulf %65, %66 : vector<78x78xf32>
    %68 = arith.addf %67, %8 : vector<78x78xf32>
    %cst_25 = arith.constant dense<0xFF800000> : vector<78xf32>
    %69 = vector.multi_reduction <maximumf>, %68, %cst_25 [1] : vector<78x78xf32> to vector<78xf32>
    %70 = vector.shape_cast %69 : vector<78xf32> to vector<78x1xf32>
    %71 = vector.broadcast %70 : vector<78x1xf32> to vector<78x78xf32>
    %72 = arith.subf %68, %71 : vector<78x78xf32>
    %73 = math.exp %72 : vector<78x78xf32>
    %cst_26 = arith.constant dense<0.000000e+00> : vector<78xf32>
    %74 = vector.multi_reduction <add>, %73, %cst_26 [1] : vector<78x78xf32> to vector<78xf32>
    %75 = vector.shape_cast %74 : vector<78xf32> to vector<78x1xf32>
    %76 = tpu.reciprocal %75 {approx = true} : vector<78x1xf32> -> vector<78x1xf32>
    %77 = vector.broadcast %76 : vector<78x1xf32> to vector<78x78xf32>
    %78 = arith.mulf %73, %77 : vector<78x78xf32>
    %79 = vector.broadcast %64 : vector<1x78xf32> to vector<78x78xf32>
    %80 = arith.mulf %78, %79 : vector<78x78xf32>
    %cst_27 = arith.constant dense<0.000000e+00> : vector<78xf32>
    %81 = vector.multi_reduction <add>, %80, %cst_27 [1] : vector<78x78xf32> to vector<78xf32>
    %82 = vector.shape_cast %81 : vector<78xf32> to vector<78x1xf32>
    %83 = vector.broadcast %51 : f32 to vector<78x1xf32>
    %84 = arith.mulf %83, %44 : vector<78x1xf32>
    %85 = vector.broadcast %52 : f32 to vector<78x1xf32>
    %86 = arith.addf %84, %85 : vector<78x1xf32>
    %87 = arith.addf %82, %86 : vector<78x1xf32>
    %cst_28 = arith.constant 0.000000e+00 : f32
    %88 = vector.broadcast %cst_28 : f32 to vector<78x1xf32>
    %89 = arith.cmpf ogt, %87, %88 : vector<78x1xf32>
    %cst_29 = arith.constant 0.00999999977 : f32
    %90 = vector.broadcast %cst_29 : f32 to vector<78x1xf32>
    %91 = arith.mulf %90, %87 : vector<78x1xf32>
    %92 = arith.select %89, %87, %91 : vector<78x1xi1>, vector<78x1xf32>
    %c1_30 = arith.constant 1 : index
    %93 = memref.load %arg3[%c1_30] : memref<64xf32, #tpu.memory_space<smem>>
    %c5_31 = arith.constant 5 : index
    %94 = memref.load %arg3[%c5_31] : memref<64xf32, #tpu.memory_space<smem>>
    %c9 = arith.constant 9 : index
    %95 = memref.load %arg3[%c9] : memref<64xf32, #tpu.memory_space<smem>>
    %c13 = arith.constant 13 : index
    %96 = memref.load %arg3[%c13] : memref<64xf32, #tpu.memory_space<smem>>
    %c17 = arith.constant 17 : index
    %97 = memref.load %arg3[%c17] : memref<64xf32, #tpu.memory_space<smem>>
    %c21 = arith.constant 21 : index
    %98 = memref.load %arg3[%c21] : memref<64xf32, #tpu.memory_space<smem>>
    %c25 = arith.constant 25 : index
    %99 = memref.load %arg3[%c25] : memref<64xf32, #tpu.memory_space<smem>>
    %c29 = arith.constant 29 : index
    %100 = memref.load %arg3[%c29] : memref<64xf32, #tpu.memory_space<smem>>
    %101 = vector.broadcast %93 : f32 to vector<78x1xf32>
    %102 = arith.mulf %101, %44 : vector<78x1xf32>
    %103 = vector.broadcast %94 : f32 to vector<78x1xf32>
    %104 = arith.addf %102, %103 : vector<78x1xf32>
    %105 = vector.broadcast %95 : f32 to vector<1x78xf32>
    %106 = arith.mulf %105, %40 : vector<1x78xf32>
    %107 = vector.broadcast %96 : f32 to vector<1x78xf32>
    %108 = arith.addf %106, %107 : vector<1x78xf32>
    %109 = vector.broadcast %97 : f32 to vector<1x78xf32>
    %110 = arith.mulf %109, %40 : vector<1x78xf32>
    %111 = vector.broadcast %98 : f32 to vector<1x78xf32>
    %112 = arith.addf %110, %111 : vector<1x78xf32>
    %113 = vector.broadcast %104 : vector<78x1xf32> to vector<78x78xf32>
    %114 = vector.broadcast %108 : vector<1x78xf32> to vector<78x78xf32>
    %115 = arith.mulf %113, %114 : vector<78x78xf32>
    %116 = arith.addf %115, %8 : vector<78x78xf32>
    %cst_32 = arith.constant dense<0xFF800000> : vector<78xf32>
    %117 = vector.multi_reduction <maximumf>, %116, %cst_32 [1] : vector<78x78xf32> to vector<78xf32>
    %118 = vector.shape_cast %117 : vector<78xf32> to vector<78x1xf32>
    %119 = vector.broadcast %118 : vector<78x1xf32> to vector<78x78xf32>
    %120 = arith.subf %116, %119 : vector<78x78xf32>
    %121 = math.exp %120 : vector<78x78xf32>
    %cst_33 = arith.constant dense<0.000000e+00> : vector<78xf32>
    %122 = vector.multi_reduction <add>, %121, %cst_33 [1] : vector<78x78xf32> to vector<78xf32>
    %123 = vector.shape_cast %122 : vector<78xf32> to vector<78x1xf32>
    %124 = tpu.reciprocal %123 {approx = true} : vector<78x1xf32> -> vector<78x1xf32>
    %125 = vector.broadcast %124 : vector<78x1xf32> to vector<78x78xf32>
    %126 = arith.mulf %121, %125 : vector<78x78xf32>
    %127 = vector.broadcast %112 : vector<1x78xf32> to vector<78x78xf32>
    %128 = arith.mulf %126, %127 : vector<78x78xf32>
    %cst_34 = arith.constant dense<0.000000e+00> : vector<78xf32>
    %129 = vector.multi_reduction <add>, %128, %cst_34 [1] : vector<78x78xf32> to vector<78xf32>
    %130 = vector.shape_cast %129 : vector<78xf32> to vector<78x1xf32>
    %131 = vector.broadcast %99 : f32 to vector<78x1xf32>
    %132 = arith.mulf %131, %44 : vector<78x1xf32>
    %133 = vector.broadcast %100 : f32 to vector<78x1xf32>
    %134 = arith.addf %132, %133 : vector<78x1xf32>
    %135 = arith.addf %130, %134 : vector<78x1xf32>
    %cst_35 = arith.constant 0.000000e+00 : f32
    %136 = vector.broadcast %cst_35 : f32 to vector<78x1xf32>
    %137 = arith.cmpf ogt, %135, %136 : vector<78x1xf32>
    %cst_36 = arith.constant 0.00999999977 : f32
    %138 = vector.broadcast %cst_36 : f32 to vector<78x1xf32>
    %139 = arith.mulf %138, %135 : vector<78x1xf32>
    %140 = arith.select %137, %135, %139 : vector<78x1xi1>, vector<78x1xf32>
    %c2_37 = arith.constant 2 : index
    %141 = memref.load %arg3[%c2_37] : memref<64xf32, #tpu.memory_space<smem>>
    %c6_38 = arith.constant 6 : index
    %142 = memref.load %arg3[%c6_38] : memref<64xf32, #tpu.memory_space<smem>>
    %c10 = arith.constant 10 : index
    %143 = memref.load %arg3[%c10] : memref<64xf32, #tpu.memory_space<smem>>
    %c14 = arith.constant 14 : index
    %144 = memref.load %arg3[%c14] : memref<64xf32, #tpu.memory_space<smem>>
    %c18 = arith.constant 18 : index
    %145 = memref.load %arg3[%c18] : memref<64xf32, #tpu.memory_space<smem>>
    %c22 = arith.constant 22 : index
    %146 = memref.load %arg3[%c22] : memref<64xf32, #tpu.memory_space<smem>>
    %c26 = arith.constant 26 : index
    %147 = memref.load %arg3[%c26] : memref<64xf32, #tpu.memory_space<smem>>
    %c30 = arith.constant 30 : index
    %148 = memref.load %arg3[%c30] : memref<64xf32, #tpu.memory_space<smem>>
    %149 = vector.broadcast %141 : f32 to vector<78x1xf32>
    %150 = arith.mulf %149, %44 : vector<78x1xf32>
    %151 = vector.broadcast %142 : f32 to vector<78x1xf32>
    %152 = arith.addf %150, %151 : vector<78x1xf32>
    %153 = vector.broadcast %143 : f32 to vector<1x78xf32>
    %154 = arith.mulf %153, %40 : vector<1x78xf32>
    %155 = vector.broadcast %144 : f32 to vector<1x78xf32>
    %156 = arith.addf %154, %155 : vector<1x78xf32>
    %157 = vector.broadcast %145 : f32 to vector<1x78xf32>
    %158 = arith.mulf %157, %40 : vector<1x78xf32>
    %159 = vector.broadcast %146 : f32 to vector<1x78xf32>
    %160 = arith.addf %158, %159 : vector<1x78xf32>
    %161 = vector.broadcast %152 : vector<78x1xf32> to vector<78x78xf32>
    %162 = vector.broadcast %156 : vector<1x78xf32> to vector<78x78xf32>
    %163 = arith.mulf %161, %162 : vector<78x78xf32>
    %164 = arith.addf %163, %8 : vector<78x78xf32>
    %cst_39 = arith.constant dense<0xFF800000> : vector<78xf32>
    %165 = vector.multi_reduction <maximumf>, %164, %cst_39 [1] : vector<78x78xf32> to vector<78xf32>
    %166 = vector.shape_cast %165 : vector<78xf32> to vector<78x1xf32>
    %167 = vector.broadcast %166 : vector<78x1xf32> to vector<78x78xf32>
    %168 = arith.subf %164, %167 : vector<78x78xf32>
    %169 = math.exp %168 : vector<78x78xf32>
    %cst_40 = arith.constant dense<0.000000e+00> : vector<78xf32>
    %170 = vector.multi_reduction <add>, %169, %cst_40 [1] : vector<78x78xf32> to vector<78xf32>
    %171 = vector.shape_cast %170 : vector<78xf32> to vector<78x1xf32>
    %172 = tpu.reciprocal %171 {approx = true} : vector<78x1xf32> -> vector<78x1xf32>
    %173 = vector.broadcast %172 : vector<78x1xf32> to vector<78x78xf32>
    %174 = arith.mulf %169, %173 : vector<78x78xf32>
    %175 = vector.broadcast %160 : vector<1x78xf32> to vector<78x78xf32>
    %176 = arith.mulf %174, %175 : vector<78x78xf32>
    %cst_41 = arith.constant dense<0.000000e+00> : vector<78xf32>
    %177 = vector.multi_reduction <add>, %176, %cst_41 [1] : vector<78x78xf32> to vector<78xf32>
    %178 = vector.shape_cast %177 : vector<78xf32> to vector<78x1xf32>
    %179 = vector.broadcast %147 : f32 to vector<78x1xf32>
    %180 = arith.mulf %179, %44 : vector<78x1xf32>
    %181 = vector.broadcast %148 : f32 to vector<78x1xf32>
    %182 = arith.addf %180, %181 : vector<78x1xf32>
    %183 = arith.addf %178, %182 : vector<78x1xf32>
    %cst_42 = arith.constant 0.000000e+00 : f32
    %184 = vector.broadcast %cst_42 : f32 to vector<78x1xf32>
    %185 = arith.cmpf ogt, %183, %184 : vector<78x1xf32>
    %cst_43 = arith.constant 0.00999999977 : f32
    %186 = vector.broadcast %cst_43 : f32 to vector<78x1xf32>
    %187 = arith.mulf %186, %183 : vector<78x1xf32>
    %188 = arith.select %185, %183, %187 : vector<78x1xi1>, vector<78x1xf32>
    %c3_44 = arith.constant 3 : index
    %189 = memref.load %arg3[%c3_44] : memref<64xf32, #tpu.memory_space<smem>>
    %c7_45 = arith.constant 7 : index
    %190 = memref.load %arg3[%c7_45] : memref<64xf32, #tpu.memory_space<smem>>
    %c11 = arith.constant 11 : index
    %191 = memref.load %arg3[%c11] : memref<64xf32, #tpu.memory_space<smem>>
    %c15 = arith.constant 15 : index
    %192 = memref.load %arg3[%c15] : memref<64xf32, #tpu.memory_space<smem>>
    %c19 = arith.constant 19 : index
    %193 = memref.load %arg3[%c19] : memref<64xf32, #tpu.memory_space<smem>>
    %c23 = arith.constant 23 : index
    %194 = memref.load %arg3[%c23] : memref<64xf32, #tpu.memory_space<smem>>
    %c27 = arith.constant 27 : index
    %195 = memref.load %arg3[%c27] : memref<64xf32, #tpu.memory_space<smem>>
    %c31 = arith.constant 31 : index
    %196 = memref.load %arg3[%c31] : memref<64xf32, #tpu.memory_space<smem>>
    %197 = vector.broadcast %189 : f32 to vector<78x1xf32>
    %198 = arith.mulf %197, %44 : vector<78x1xf32>
    %199 = vector.broadcast %190 : f32 to vector<78x1xf32>
    %200 = arith.addf %198, %199 : vector<78x1xf32>
    %201 = vector.broadcast %191 : f32 to vector<1x78xf32>
    %202 = arith.mulf %201, %40 : vector<1x78xf32>
    %203 = vector.broadcast %192 : f32 to vector<1x78xf32>
    %204 = arith.addf %202, %203 : vector<1x78xf32>
    %205 = vector.broadcast %193 : f32 to vector<1x78xf32>
    %206 = arith.mulf %205, %40 : vector<1x78xf32>
    %207 = vector.broadcast %194 : f32 to vector<1x78xf32>
    %208 = arith.addf %206, %207 : vector<1x78xf32>
    %209 = vector.broadcast %200 : vector<78x1xf32> to vector<78x78xf32>
    %210 = vector.broadcast %204 : vector<1x78xf32> to vector<78x78xf32>
    %211 = arith.mulf %209, %210 : vector<78x78xf32>
    %212 = arith.addf %211, %8 : vector<78x78xf32>
    %cst_46 = arith.constant dense<0xFF800000> : vector<78xf32>
    %213 = vector.multi_reduction <maximumf>, %212, %cst_46 [1] : vector<78x78xf32> to vector<78xf32>
    %214 = vector.shape_cast %213 : vector<78xf32> to vector<78x1xf32>
    %215 = vector.broadcast %214 : vector<78x1xf32> to vector<78x78xf32>
    %216 = arith.subf %212, %215 : vector<78x78xf32>
    %217 = math.exp %216 : vector<78x78xf32>
    %cst_47 = arith.constant dense<0.000000e+00> : vector<78xf32>
    %218 = vector.multi_reduction <add>, %217, %cst_47 [1] : vector<78x78xf32> to vector<78xf32>
    %219 = vector.shape_cast %218 : vector<78xf32> to vector<78x1xf32>
    %220 = tpu.reciprocal %219 {approx = true} : vector<78x1xf32> -> vector<78x1xf32>
    %221 = vector.broadcast %220 : vector<78x1xf32> to vector<78x78xf32>
    %222 = arith.mulf %217, %221 : vector<78x78xf32>
    %223 = vector.broadcast %208 : vector<1x78xf32> to vector<78x78xf32>
    %224 = arith.mulf %222, %223 : vector<78x78xf32>
    %cst_48 = arith.constant dense<0.000000e+00> : vector<78xf32>
    %225 = vector.multi_reduction <add>, %224, %cst_48 [1] : vector<78x78xf32> to vector<78xf32>
    %226 = vector.shape_cast %225 : vector<78xf32> to vector<78x1xf32>
    %227 = vector.broadcast %195 : f32 to vector<78x1xf32>
    %228 = arith.mulf %227, %44 : vector<78x1xf32>
    %229 = vector.broadcast %196 : f32 to vector<78x1xf32>
    %230 = arith.addf %228, %229 : vector<78x1xf32>
    %231 = arith.addf %226, %230 : vector<78x1xf32>
    %cst_49 = arith.constant 0.000000e+00 : f32
    %232 = vector.broadcast %cst_49 : f32 to vector<78x1xf32>
    %233 = arith.cmpf ogt, %231, %232 : vector<78x1xf32>
    %cst_50 = arith.constant 0.00999999977 : f32
    %234 = vector.broadcast %cst_50 : f32 to vector<78x1xf32>
    %235 = arith.mulf %234, %231 : vector<78x1xf32>
    %236 = arith.select %233, %231, %235 : vector<78x1xi1>, vector<78x1xf32>
    %c48 = arith.constant 48 : index
    %237 = memref.load %arg3[%c48] : memref<64xf32, #tpu.memory_space<smem>>
    %c49 = arith.constant 49 : index
    %238 = memref.load %arg3[%c49] : memref<64xf32, #tpu.memory_space<smem>>
    %c50 = arith.constant 50 : index
    %239 = memref.load %arg3[%c50] : memref<64xf32, #tpu.memory_space<smem>>
    %c51 = arith.constant 51 : index
    %240 = memref.load %arg3[%c51] : memref<64xf32, #tpu.memory_space<smem>>
    %c32 = arith.constant 32 : index
    %241 = memref.load %arg3[%c32] : memref<64xf32, #tpu.memory_space<smem>>
    %242 = vector.broadcast %241 : f32 to vector<78x1xf32>
    %243 = arith.mulf %242, %92 : vector<78x1xf32>
    %c33 = arith.constant 33 : index
    %244 = memref.load %arg3[%c33] : memref<64xf32, #tpu.memory_space<smem>>
    %245 = vector.broadcast %244 : f32 to vector<78x1xf32>
    %246 = arith.mulf %245, %140 : vector<78x1xf32>
    %247 = arith.addf %243, %246 : vector<78x1xf32>
    %c34 = arith.constant 34 : index
    %248 = memref.load %arg3[%c34] : memref<64xf32, #tpu.memory_space<smem>>
    %249 = vector.broadcast %248 : f32 to vector<78x1xf32>
    %250 = arith.mulf %249, %188 : vector<78x1xf32>
    %251 = arith.addf %247, %250 : vector<78x1xf32>
    %c35 = arith.constant 35 : index
    %252 = memref.load %arg3[%c35] : memref<64xf32, #tpu.memory_space<smem>>
    %253 = vector.broadcast %252 : f32 to vector<78x1xf32>
    %254 = arith.mulf %253, %236 : vector<78x1xf32>
    %255 = arith.addf %251, %254 : vector<78x1xf32>
    %256 = vector.broadcast %237 : f32 to vector<78x1xf32>
    %257 = arith.addf %255, %256 : vector<78x1xf32>
    %c36 = arith.constant 36 : index
    %258 = memref.load %arg3[%c36] : memref<64xf32, #tpu.memory_space<smem>>
    %259 = vector.broadcast %258 : f32 to vector<78x1xf32>
    %260 = arith.mulf %259, %92 : vector<78x1xf32>
    %c37 = arith.constant 37 : index
    %261 = memref.load %arg3[%c37] : memref<64xf32, #tpu.memory_space<smem>>
    %262 = vector.broadcast %261 : f32 to vector<78x1xf32>
    %263 = arith.mulf %262, %140 : vector<78x1xf32>
    %264 = arith.addf %260, %263 : vector<78x1xf32>
    %c38 = arith.constant 38 : index
    %265 = memref.load %arg3[%c38] : memref<64xf32, #tpu.memory_space<smem>>
    %266 = vector.broadcast %265 : f32 to vector<78x1xf32>
    %267 = arith.mulf %266, %188 : vector<78x1xf32>
    %268 = arith.addf %264, %267 : vector<78x1xf32>
    %c39 = arith.constant 39 : index
    %269 = memref.load %arg3[%c39] : memref<64xf32, #tpu.memory_space<smem>>
    %270 = vector.broadcast %269 : f32 to vector<78x1xf32>
    %271 = arith.mulf %270, %236 : vector<78x1xf32>
    %272 = arith.addf %268, %271 : vector<78x1xf32>
    %273 = vector.broadcast %238 : f32 to vector<78x1xf32>
    %274 = arith.addf %272, %273 : vector<78x1xf32>
    %c40 = arith.constant 40 : index
    %275 = memref.load %arg3[%c40] : memref<64xf32, #tpu.memory_space<smem>>
    %276 = vector.broadcast %275 : f32 to vector<78x1xf32>
    %277 = arith.mulf %276, %92 : vector<78x1xf32>
    %c41 = arith.constant 41 : index
    %278 = memref.load %arg3[%c41] : memref<64xf32, #tpu.memory_space<smem>>
    %279 = vector.broadcast %278 : f32 to vector<78x1xf32>
    %280 = arith.mulf %279, %140 : vector<78x1xf32>
    %281 = arith.addf %277, %280 : vector<78x1xf32>
    %c42 = arith.constant 42 : index
    %282 = memref.load %arg3[%c42] : memref<64xf32, #tpu.memory_space<smem>>
    %283 = vector.broadcast %282 : f32 to vector<78x1xf32>
    %284 = arith.mulf %283, %188 : vector<78x1xf32>
    %285 = arith.addf %281, %284 : vector<78x1xf32>
    %c43 = arith.constant 43 : index
    %286 = memref.load %arg3[%c43] : memref<64xf32, #tpu.memory_space<smem>>
    %287 = vector.broadcast %286 : f32 to vector<78x1xf32>
    %288 = arith.mulf %287, %236 : vector<78x1xf32>
    %289 = arith.addf %285, %288 : vector<78x1xf32>
    %290 = vector.broadcast %239 : f32 to vector<78x1xf32>
    %291 = arith.addf %289, %290 : vector<78x1xf32>
    %c44 = arith.constant 44 : index
    %292 = memref.load %arg3[%c44] : memref<64xf32, #tpu.memory_space<smem>>
    %293 = vector.broadcast %292 : f32 to vector<78x1xf32>
    %294 = arith.mulf %293, %92 : vector<78x1xf32>
    %c45 = arith.constant 45 : index
    %295 = memref.load %arg3[%c45] : memref<64xf32, #tpu.memory_space<smem>>
    %296 = vector.broadcast %295 : f32 to vector<78x1xf32>
    %297 = arith.mulf %296, %140 : vector<78x1xf32>
    %298 = arith.addf %294, %297 : vector<78x1xf32>
    %c46 = arith.constant 46 : index
    %299 = memref.load %arg3[%c46] : memref<64xf32, #tpu.memory_space<smem>>
    %300 = vector.broadcast %299 : f32 to vector<78x1xf32>
    %301 = arith.mulf %300, %188 : vector<78x1xf32>
    %302 = arith.addf %298, %301 : vector<78x1xf32>
    %c47 = arith.constant 47 : index
    %303 = memref.load %arg3[%c47] : memref<64xf32, #tpu.memory_space<smem>>
    %304 = vector.broadcast %303 : f32 to vector<78x1xf32>
    %305 = arith.mulf %304, %236 : vector<78x1xf32>
    %306 = arith.addf %302, %305 : vector<78x1xf32>
    %307 = vector.broadcast %240 : f32 to vector<78x1xf32>
    %308 = arith.addf %306, %307 : vector<78x1xf32>
    %309 = vector.broadcast %257 : vector<78x1xf32> to vector<78x78xf32>
    %310 = arith.mulf %10, %309 : vector<78x78xf32>
    %cst_51 = arith.constant dense<0.000000e+00> : vector<78xf32>
    %311 = vector.multi_reduction <add>, %310, %cst_51 [0] : vector<78x78xf32> to vector<78xf32>
    %312 = vector.shape_cast %311 : vector<78xf32> to vector<1x78xf32>
    %313 = vector.broadcast %308 : vector<78x1xf32> to vector<78x78xf32>
    %314 = arith.mulf %10, %313 : vector<78x78xf32>
    %cst_52 = arith.constant dense<0.000000e+00> : vector<78xf32>
    %315 = vector.multi_reduction <add>, %314, %cst_52 [0] : vector<78x78xf32> to vector<78xf32>
    %316 = vector.shape_cast %315 : vector<78xf32> to vector<1x78xf32>
    %317 = vector.broadcast %274 : vector<78x1xf32> to vector<78x78xf32>
    %318 = vector.broadcast %312 : vector<1x78xf32> to vector<78x78xf32>
    %319 = arith.mulf %317, %318 : vector<78x78xf32>
    %320 = arith.addf %319, %9 : vector<78x78xf32>
    %cst_53 = arith.constant dense<0xFF800000> : vector<78xf32>
    %321 = vector.multi_reduction <maximumf>, %320, %cst_53 [0] : vector<78x78xf32> to vector<78xf32>
    %322 = vector.shape_cast %321 : vector<78xf32> to vector<1x78xf32>
    %323 = vector.broadcast %322 : vector<1x78xf32> to vector<78x78xf32>
    %324 = arith.subf %320, %323 : vector<78x78xf32>
    %325 = math.exp %324 : vector<78x78xf32>
    %cst_54 = arith.constant dense<0.000000e+00> : vector<78xf32>
    %326 = vector.multi_reduction <add>, %325, %cst_54 [0] : vector<78x78xf32> to vector<78xf32>
    %327 = vector.shape_cast %326 : vector<78xf32> to vector<1x78xf32>
    %328 = tpu.reciprocal %327 {approx = true} : vector<1x78xf32> -> vector<1x78xf32>
    %329 = vector.broadcast %328 : vector<1x78xf32> to vector<78x78xf32>
    %330 = arith.mulf %325, %329 : vector<78x78xf32>
    %331 = vector.broadcast %291 : vector<78x1xf32> to vector<78x78xf32>
    %332 = arith.mulf %330, %331 : vector<78x78xf32>
    %cst_55 = arith.constant dense<0.000000e+00> : vector<78xf32>
    %333 = vector.multi_reduction <add>, %332, %cst_55 [0] : vector<78x78xf32> to vector<78xf32>
    %334 = vector.shape_cast %333 : vector<78xf32> to vector<1x78xf32>
    %335 = arith.addf %334, %316 : vector<1x78xf32>
    %cst_56 = arith.constant 0.000000e+00 : f32
    %336 = vector.broadcast %cst_56 : f32 to vector<1x78xf32>
    %337 = arith.cmpf ogt, %335, %336 : vector<1x78xf32>
    %cst_57 = arith.constant 0.00999999977 : f32
    %338 = vector.broadcast %cst_57 : f32 to vector<1x78xf32>
    %339 = arith.mulf %338, %335 : vector<1x78xf32>
    %340 = arith.select %337, %335, %339 : vector<1x78xi1>, vector<1x78xf32>
    %cst_58 = arith.constant dense<0.000000e+00> : vector<1xf32>
    %341 = vector.multi_reduction <add>, %340, %cst_58 [1] : vector<1x78xf32> to vector<1xf32>
    %342 = vector.shape_cast %341 : vector<1xf32> to vector<1x1xf32>
    %cst_59 = arith.constant 7.800000e+01 : f32
    %343 = vector.broadcast %cst_59 : f32 to vector<1x1xf32>
    %344 = arith.divf %342, %343 : vector<1x1xf32>
    %345 = vector.broadcast %344 : vector<1x1xf32> to vector<1x78xf32>
    %346 = arith.subf %340, %345 : vector<1x78xf32>
    %347 = arith.mulf %346, %346 : vector<1x78xf32>
    %cst_60 = arith.constant dense<0.000000e+00> : vector<1xf32>
    %348 = vector.multi_reduction <add>, %347, %cst_60 [1] : vector<1x78xf32> to vector<1xf32>
    %349 = vector.shape_cast %348 : vector<1xf32> to vector<1x1xf32>
    %cst_61 = arith.constant 7.800000e+01 : f32
    %350 = vector.broadcast %cst_61 : f32 to vector<1x1xf32>
    %351 = arith.divf %349, %350 : vector<1x1xf32>
    %352 = vector.broadcast %344 : vector<1x1xf32> to vector<1x78xf32>
    %353 = arith.subf %340, %352 : vector<1x78xf32>
    %cst_62 = arith.constant 9.99999974E-6 : f32
    %354 = vector.broadcast %cst_62 : f32 to vector<1x1xf32>
    %355 = arith.addf %351, %354 : vector<1x1xf32>
    %356 = math.rsqrt %355 : vector<1x1xf32>
    %357 = vector.broadcast %356 : vector<1x1xf32> to vector<1x78xf32>
    %358 = arith.mulf %353, %357 : vector<1x78xf32>
    %359 = arith.mulf %358, %5 : vector<1x78xf32>
    %360 = arith.addf %359, %6 : vector<1x78xf32>
    %cst_63 = arith.constant dense<0.000000e+00> : vector<1x2xf32>
    %361 = tpu.matmul %360, %11, %cst_63 {dimension_numbers = #tpu.dot_dimension_numbers<[1], [0], [0], [1], [0, 0, 1, 1], [], []>} : vector<1x78xf32>, vector<78x2xf32>, vector<1x2xf32> -> vector<1x2xf32>
    %362 = arith.addf %361, %7 : vector<1x2xf32>
    %c0_64 = arith.constant 0 : index
    %c0_65 = arith.constant 0 : index
    %363 = vector.load %arg4[%c0_64, %c0_65] : memref<1x2xf32, #tpu.memory_space<vmem>>, vector<1x2xf32>
    tpu.vector_store %arg4[%c0_64, %c0_65], %362 {strides = array<i32>} : memref<1x2xf32, #tpu.memory_space<vmem>>, vector<1x2xf32>,
    return
  }
}

</mosaic_0001>

<llo_original>
// kernel: graph_test_forward.1
$region0: #{graph_test_forward.1}
  #allocation0 [shape = 'u32[]', space=smem, size = 0x4, offset = 0x4, fixed_abs, tag = 'smem constant byte address 0x4 - core index']
  #allocation1 [shape = 'u32[72,128]{1,0:T(1,128)}', space=vmem, size = 0x9000, scoped, tag = 'internal scratch']
  %s0 = inlined_call_operand.vmem [shape: f32[8,384], index: 0, kind: input, shape index: {}]
  %s1 = inlined_call_operand.vmem [shape: f32[384,78], index: 1, kind: input, shape index: {}]
  %s2 = inlined_call_operand.vmem [shape: f32[78,386], index: 2, kind: input, shape index: {}]
  %s3 = inlined_call_operand.vmem [shape: f32[64], index: 3, kind: input, shape index: {}]
  %s4 = inlined_call_operand.hbm [shape: f32[1,2], index: 4, kind: output, shape index: {}]
  %s5 = sld [smem:[#allocation0]]
  $region30: #{graph_test_forward.1} parent=0
    _
  %s7 = ssub.s32 1, %s5
  %s8 = scalar_select 0, %s7, %s5
  $region1: #{graph_test_forward.1} parent=0
    #allocation2 [shape = 'u8[512]{0}', space=smem, size = 0x200, scoped, tag = 'input window, operand 3, single buffered']
    #allocation3 [shape = 's32[1]{0}', space=sflag, size = 0x4, scoped, tag = 'scoped memory for graph_test_forward.1']
    #allocation4 [shape = 's32[1]{0}', space=sflag, size = 0x4, scoped, tag = 'scoped memory for graph_test_forward.1']
    #allocation5 [shape = 'u8[512]{0}', space=vmem, size = 0x400, scoped, tag = 'output window, operand 0, single buffered']
    %9 = vsyncpa [#allocation4], 0
    %10 = vsyncpa [#allocation3], 0
    // Predicated region
    $region2: #{graph_test_forward.1} parent=1 // pred_check
      _
    $region3: #{graph_test_forward.1} parent=1 // pred_check_branch
      %12 = sbr.rel (0) target = $region5
    $region4: #{graph_test_forward.1} parent=1 // pred_region
      _
    $region5: #{graph_test_forward.1} parent=1 // pred_fallthru
      _
    // Predicated region
    $region6: #{graph_test_forward.1} parent=1 // pred_check
      _
    $region7: #{graph_test_forward.1} parent=1 // pred_check_branch
      %14 = sbr.rel (0) target = $region9
    $region8: #{graph_test_forward.1} parent=1 // pred_region
      _
    $region9: #{graph_test_forward.1} parent=1 // pred_fallthru
      _
    // Predicated region
    $region10: #{graph_test_forward.1} parent=1 // pred_check
      _
    $region11: #{graph_test_forward.1} parent=1 // pred_check_branch
      %16 = sbr.rel (0) target = $region13
    $region12: #{graph_test_forward.1} parent=1 // pred_region
      _
    $region13: #{graph_test_forward.1} parent=1 // pred_fallthru
      _
    // Predicated region
    $region14: #{graph_test_forward.1} parent=1 // pred_check
      _
    $region15: #{graph_test_forward.1} parent=1 // pred_check_branch
      %18 = sbr.rel (0) target = $region17
    $region16: #{graph_test_forward.1} parent=1 // pred_region
      %20 = vsyncadd [#allocation4], 0
      %s22 = sshll.u32 %s3, 4
      %s23 = int_to_ptr.vmem [resolvable:$true] %s22
      %25 = dma.vmem_to_smem %s23, 16, [#allocation2], [#allocation4]
    $region17: #{graph_test_forward.1} parent=1 // pred_fallthru
      _
    // Predicated region
    $region18: #{graph_test_forward.1} parent=1 // pred_check
      _
    $region19: #{graph_test_forward.1} parent=1 // pred_check_branch
      %27 = sbr.rel (0) target = $region21
    $region20: #{graph_test_forward.1} parent=1 // pred_region
      %29 = dma.done [#allocation4], 16
    $region21: #{graph_test_forward.1} parent=1 // pred_fallthru
      _
    %30 = sfence
    %v31 = vld [vmem:[%s0] ss:$8 sm:$0x7]
    %s32 = scalar_lea.vmem %s0, 1
    %v33 = vld [vmem:[%s32] ss:$8 sm:$0x7]
    %s34 = scalar_lea.vmem %s0, 2
    %v35 = vld [vmem:[%s34] ss:$8 sm:$0x7]
    %v36 = vld [vmem:[%s0 + $0x3] ss:$0 sm:$0xff]
    %v37 = vld [vmem:[%s0 + $0x4] ss:$0 sm:$0xff]
    %v38 = vld [vmem:[%s0 + $0x5] ss:$0 sm:$0xff]
    %v39 = vld [vmem:[%s0 + $0x6] ss:$0 sm:$0xff]
    %v40 = vld [vmem:[%s0 + $0x7] ss:$0 sm:$0xff]
    %v41 = vld [vmem:[%s2] sm:$0xff]
    %v42 = vld [vmem:[%s2 + $0x20] sm:$0xff]
    %v43 = vld [vmem:[%s2 + $0x40] sm:$0xff]
    %v44 = vld [vmem:[%s2 + $0x60] sm:$0xff]
    %v45 = vld [vmem:[%s2 + $0x80] sm:$0xff]
    %v46 = vld [vmem:[%s2 + $0xa0] sm:$0xff]
    %v47 = vld [vmem:[%s2 + $0xc0] sm:$0xff]
    %v48 = vld [vmem:[%s2 + $0xe0] sm:$0xff]
    %v49 = vld [vmem:[%s2 + $0x100] sm:$0xff]
    %v50 = vld [vmem:[%s2 + $0x120] sm:$0x3f]
    %v51 = vld [vmem:[%s2 + $0x8] sm:$0xff]
    %v52 = vld [vmem:[%s2 + $0x28] sm:$0xff]
    %v53 = vld [vmem:[%s2 + $0x48] sm:$0xff]
    %v54 = vld [vmem:[%s2 + $0x68] sm:$0xff]
    %v55 = vld [vmem:[%s2 + $0x88] sm:$0xff]
    %v56 = vld [vmem:[%s2 + $0xa8] sm:$0xff]
    %v57 = vld [vmem:[%s2 + $0xc8] sm:$0xff]
    %v58 = vld [vmem:[%s2 + $0xe8] sm:$0xff]
    %v59 = vld [vmem:[%s2 + $0x108] sm:$0xff]
    %v60 = vld [vmem:[%s2 + $0x128] sm:$0x3f]
    %v61 = vld [vmem:[%s2 + $0x10] sm:$0xff]
    %v62 = vld [vmem:[%s2 + $0x30] sm:$0xff]
    %v63 = vld [vmem:[%s2 + $0x50] sm:$0xff]
    %v64 = vld [vmem:[%s2 + $0x70] sm:$0xff]
    %v65 = vld [vmem:[%s2 + $0x90] sm:$0xff]
    %v66 = vld [vmem:[%s2 + $0xb0] sm:$0xff]
    %v67 = vld [vmem:[%s2 + $0xd0] sm:$0xff]
    %v68 = vld [vmem:[%s2 + $0xf0] sm:$0xff]
    %v69 = vld [vmem:[%s2 + $0x110] sm:$0xff]
    %v70 = vld [vmem:[%s2 + $0x130] sm:$0x3f]
    %v71 = vld [vmem:[%s2 + $0x18] sm:$0xff]
    %v72 = vld [vmem:[%s2 + $0x38] sm:$0xff]
    %v73 = vld [vmem:[%s2 + $0x58] sm:$0xff]
    %v74 = vld [vmem:[%s2 + $0x78] sm:$0xff]
    %v75 = vld [vmem:[%s2 + $0x98] sm:$0xff]
    %v76 = vld [vmem:[%s2 + $0xb8] sm:$0xff]
    %v77 = vld [vmem:[%s2 + $0xd8] sm:$0xff]
    %v78 = vld [vmem:[%s2 + $0xf8] sm:$0xff]
    %v79 = vld [vmem:[%s2 + $0x118] sm:$0xff]
    %v80 = vld [vmem:[%s2 + $0x138] sm:$0x3f]
    %v82 = vperm.slane %v31, 0
    %v83 = vperm.slane %v31, 1
    %v84 = vperm.slane %v31, 2
    %vm88 = vcmask 1040384
    %v89 = vsel %vm88, %v82, 0.0
    %v90 = vsel %vm88, %v83, 0.0
    %v91 = vadd.f32 %v89, %v90
    %v92 = vsel %vm88, %v84, 0.0
    %v93 = vadd.f32 %v91, %v92
    %94 = vadd.xlane.f32.xlu0 %v93
    %v95 = vpop.xlane.xlu0 %94
    %v96 = vrcp.pop 384.0
    %v97 = vmul.f32 384.0, %v96
    %v98 = vsub.f32 1.0, %v97
    %v99 = vmul.f32 %v96, %v98
    %v100 = vadd.f32 %v96, %v99
    %vm101 = vweird.f32 %v96
    %v102 = vsel %vm101, %v96, %v100
    %v103 = vmul.f32 %v95, %v102
    %v105 = vperm.slane %v103, 0
    %v107 = vsub.f32 %v31, %v105
    %v108 = vmul.f32 %v107, %v107
    %v110 = vperm.slane %v108, 0
    %v111 = vperm.slane %v108, 1
    %v112 = vperm.slane %v108, 2
    %v116 = vsel %vm88, %v110, 0.0
    %v117 = vsel %vm88, %v111, 0.0
    %v118 = vadd.f32 %v116, %v117
    %v119 = vsel %vm88, %v112, 0.0
    %v120 = vadd.f32 %v118, %v119
    %121 = vadd.xlane.f32.xlu0 %v120
    %v122 = vpop.xlane.xlu0 %121
    %v123 = vmul.f32 %v122, %v102
    %v124 = vadd.f32 %v123, 1e-05
    %v125 = vrsqrt.pop %v124
    %v126 = vmul.f32 %v125, %v124
    %v127 = vmul.f32 %v126, %v125
    %v128 = vmul.f32 0.5, %v127
    %v129 = vsub.f32 1.5, %v128
    %v130 = vmul.f32 %v125, %v129
    %vm131 = vweird.f32 %v124
    %vm132 = vweird.f32 %v125
    %vm133 = vmor %vm131, %vm132
    %v134 = vsel %vm133, %v125, %v130
    %v136 = vperm.slane %v134, 0
    %v138 = vmul.f32 %v107, %v136
    %v139 = vmul.f32 %v138, %v33
    %v140 = vadd.f32 %v139, %v35
    %v141 = vld [vmem:[%s1] sm:$0xff]
    %v142 = vld [vmem:[%s1 + $0x8] sm:$0xff]
    %v143 = vld [vmem:[%s1 + $0x10] sm:$0xff]
    %v144 = vld [vmem:[%s1 + $0x18] sm:$0xff]
    %v145 = vld [vmem:[%s1 + $0x20] sm:$0xff]
    %v146 = vld [vmem:[%s1 + $0x28] sm:$0xff]
    %v147 = vld [vmem:[%s1 + $0x30] sm:$0xff]
    %v148 = vld [vmem:[%s1 + $0x38] sm:$0xff]
    %v149 = vld [vmem:[%s1 + $0x40] sm:$0xff]
    %v150 = vld [vmem:[%s1 + $0x48] sm:$0xff]
    %v151 = vld [vmem:[%s1 + $0x50] sm:$0xff]
    %v152 = vld [vmem:[%s1 + $0x58] sm:$0xff]
    %v153 = vld [vmem:[%s1 + $0x60] sm:$0xff]
    %v154 = vld [vmem:[%s1 + $0x68] sm:$0xff]
    %v155 = vld [vmem:[%s1 + $0x70] sm:$0xff]
    %v156 = vld [vmem:[%s1 + $0x78] sm:$0xff]
    %v157 = vld [vmem:[%s1 + $0x80] sm:$0xff]
    %v158 = vld [vmem:[%s1 + $0x88] sm:$0xff]
    %v159 = vld [vmem:[%s1 + $0x90] sm:$0xff]
    %v160 = vld [vmem:[%s1 + $0x98] sm:$0xff]
    %v161 = vld [vmem:[%s1 + $0xa0] sm:$0xff]
    %v162 = vld [vmem:[%s1 + $0xa8] sm:$0xff]
    %v163 = vld [vmem:[%s1 + $0xb0] sm:$0xff]
    %v164 = vld [vmem:[%s1 + $0xb8] sm:$0xff]
    %v165 = vld [vmem:[%s1 + $0xc0] sm:$0xff]
    %v166 = vld [vmem:[%s1 + $0xc8] sm:$0xff]
    %v167 = vld [vmem:[%s1 + $0xd0] sm:$0xff]
    %v168 = vld [vmem:[%s1 + $0xd8] sm:$0xff]
    %v169 = vld [vmem:[%s1 + $0xe0] sm:$0xff]
    %v170 = vld [vmem:[%s1 + $0xe8] sm:$0xff]
    %v171 = vld [vmem:[%s1 + $0xf0] sm:$0xff]
    %v172 = vld [vmem:[%s1 + $0xf8] sm:$0xff]
    %v173 = vld [vmem:[%s1 + $0x100] sm:$0xff]
    %v174 = vld [vmem:[%s1 + $0x108] sm:$0xff]
    %v175 = vld [vmem:[%s1 + $0x110] sm:$0xff]
    %v176 = vld [vmem:[%s1 + $0x118] sm:$0xff]
    %v177 = vld [vmem:[%s1 + $0x120] sm:$0xff]
    %v178 = vld [vmem:[%s1 + $0x128] sm:$0xff]
    %v179 = vld [vmem:[%s1 + $0x130] sm:$0xff]
    %v180 = vld [vmem:[%s1 + $0x138] sm:$0xff]
    %v181 = vld [vmem:[%s1 + $0x140] sm:$0xff]
    %v182 = vld [vmem:[%s1 + $0x148] sm:$0xff]
    %v183 = vld [vmem:[%s1 + $0x150] sm:$0xff]
    %v184 = vld [vmem:[%s1 + $0x158] sm:$0xff]
    %v185 = vld [vmem:[%s1 + $0x160] sm:$0xff]
    %v186 = vld [vmem:[%s1 + $0x168] sm:$0xff]
    %v187 = vld [vmem:[%s1 + $0x170] sm:$0xff]
    %v188 = vld [vmem:[%s1 + $0x178] sm:$0xff]
    %v190 = vperm.slane %v140, 0
    %v191 = vperm.slane %v140, 1
    %v192 = vperm.slane %v140, 2
    %196 = vmatpush.msra.mxu0 %v156
    %197 = vmatpush.msra.mxu0 %v155
    %198 = vmatpush.msra.mxu0 %v154
    %199 = vmatpush.msra.mxu0 %v153
    %200 = vmatpush.msra.mxu0 %v152
    %201 = vmatpush.msra.mxu0 %v151
    %202 = vmatpush.msra.mxu0 %v150
    %203 = vmatpush.msra.mxu0 %v149
    %204 = vmatpush.msra.mxu0 %v148
    %205 = vmatpush.msra.mxu0 %v147
    %206 = vmatpush.msra.mxu0 %v146
    %207 = vmatpush.msra.mxu0 %v145
    %208 = vmatpush.msra.mxu0 %v144
    %209 = vmatpush.msra.mxu0 %v143
    %210 = vmatpush.msra.mxu0 %v142
    %211 = vmatpush.msra.mxu0 %v141
    %212 = vmatmul.f32.gmra.mxu0 %v190
    %v213 = vpop.f32.mrf.mxu0
    %v214 = vadd.f32 %v37, %v213
    %215 = vdwg.mxu0
    %216 = vmatpush.msra.mxu0 %v172
    %217 = vmatpush.msra.mxu0 %v171
    %218 = vmatpush.msra.mxu0 %v170
    %219 = vmatpush.msra.mxu0 %v169
    %220 = vmatpush.msra.mxu0 %v168
    %221 = vmatpush.msra.mxu0 %v167
    %222 = vmatpush.msra.mxu0 %v166
    %223 = vmatpush.msra.mxu0 %v165
    %224 = vmatpush.msra.mxu0 %v164
    %225 = vmatpush.msra.mxu0 %v163
    %226 = vmatpush.msra.mxu0 %v162
    %227 = vmatpush.msra.mxu0 %v161
    %228 = vmatpush.msra.mxu0 %v160
    %229 = vmatpush.msra.mxu0 %v159
    %230 = vmatpush.msra.mxu0 %v158
    %231 = vmatpush.msra.mxu0 %v157
    %232 = vmatmul.f32.gmra.mxu0 %v191
    %v233 = vpop.f32.mrf.mxu0
    %v234 = vadd.f32 %v214, %v233
    %235 = vdwg.mxu0
    %236 = vmatpush.msra.mxu0 %v188
    %237 = vmatpush.msra.mxu0 %v187
    %238 = vmatpush.msra.mxu0 %v186
    %239 = vmatpush.msra.mxu0 %v185
    %240 = vmatpush.msra.mxu0 %v184
    %241 = vmatpush.msra.mxu0 %v183
    %242 = vmatpush.msra.mxu0 %v182
    %243 = vmatpush.msra.mxu0 %v181
    %244 = vmatpush.msra.mxu0 %v180
    %245 = vmatpush.msra.mxu0 %v179
    %246 = vmatpush.msra.mxu0 %v178
    %247 = vmatpush.msra.mxu0 %v177
    %248 = vmatpush.msra.mxu0 %v176
    %249 = vmatpush.msra.mxu0 %v175
    %250 = vmatpush.msra.mxu0 %v174
    %251 = vmatpush.msra.mxu0 %v173
    %252 = vmatmul.f32.gmra.mxu0 %v192
    %v253 = vpop.f32.mrf.mxu0
    %v254 = vadd.f32 %v234, %v253
    %255 = vdwg.mxu0
    %vm256 = vcmp.gt.f32.partialorder %v254, 0.0
    %v257 = vmul.f32 %v254, 0.01
    %v258 = vsel %vm256, %v254, %v257
    %v259 = vadd.f32 %v36, %v258
    %v260 = vperm.slane %v259, 0
    %v261 = vmul.f32 %v61, %v260
    %v262 = vmul.f32 %v62, %v260
    %v263 = vmul.f32 %v63, %v260
    %v264 = vmul.f32 %v64, %v260
    %v265 = vmul.f32 %v65, %v260
    %v266 = vmul.f32 %v66, %v260
    %v267 = vmul.f32 %v67, %v260
    %v268 = vmul.f32 %v68, %v260
    %v269 = vmul.f32 %v69, %v260
    %v270 = vmul.f32 %v70, %v260
    %vm271 = vcmask 637952
    %v272 = vsel %vm271, %v261, 0.0
    %273 = vadd.xlane.f32.xlu0 %v272
    %v274 = vpop.xlane.xlu0 %273
    %v275 = vsel %vm271, %v262, 0.0
    %276 = vadd.xlane.f32.xlu0 %v275
    %v277 = vpop.xlane.xlu0 %276
    %v278 = vsel %vm271, %v263, 0.0
    %279 = vadd.xlane.f32.xlu0 %v278
    %v280 = vpop.xlane.xlu0 %279
    %v281 = vsel %vm271, %v264, 0.0
    %282 = vadd.xlane.f32.xlu0 %v281
    %v283 = vpop.xlane.xlu0 %282
    %v284 = vsel %vm271, %v265, 0.0
    %285 = vadd.xlane.f32.xlu0 %v284
    %v286 = vpop.xlane.xlu0 %285
    %v287 = vsel %vm271, %v266, 0.0
    %288 = vadd.xlane.f32.xlu0 %v287
    %v289 = vpop.xlane.xlu0 %288
    %v290 = vsel %vm271, %v267, 0.0
    %291 = vadd.xlane.f32.xlu0 %v290
    %v292 = vpop.xlane.xlu0 %291
    %v293 = vsel %vm271, %v268, 0.0
    %294 = vadd.xlane.f32.xlu0 %v293
    %v295 = vpop.xlane.xlu0 %294
    %v296 = vsel %vm271, %v269, 0.0
    %297 = vadd.xlane.f32.xlu0 %v296
    %v298 = vpop.xlane.xlu0 %297
    %vm299 = vcmask 635904
    %v300 = vsel %vm299, %v270, 0.0
    %301 = vadd.xlane.f32.xlu0 %v300
    %v302 = vpop.xlane.xlu0 %301
    %s303 = sld [smem:[#allocation2]]
    %s304 = sld [smem:[#allocation2 + $0x4]]
    %s305 = sld [smem:[#allocation2 + $0x8]]
    %s306 = sld [smem:[#allocation2 + $0xc]]
    %s307 = sld [smem:[#allocation2 + $0x10]]
    %s308 = sld [smem:[#allocation2 + $0x14]]
    %s309 = sld [smem:[#allocation2 + $0x18]]
    %s310 = sld [smem:[#allocation2 + $0x1c]]
    %v311 = vstv %s303
    %v312 = vmul.f32 %v311, %v274
    %v313 = vmul.f32 %v311, %v277
    %v314 = vmul.f32 %v311, %v280
    %v315 = vmul.f32 %v311, %v283
    %v316 = vmul.f32 %v311, %v286
    %v317 = vmul.f32 %v311, %v289
    %v318 = vmul.f32 %v311, %v292
    %v319 = vmul.f32 %v311, %v295
    %v320 = vmul.f32 %v311, %v298
    %v321 = vmul.f32 %v311, %v302
    %v322 = vstv %s304
    %v323 = vadd.f32 %v312, %v322
    %v324 = vadd.f32 %v313, %v322
    %v325 = vadd.f32 %v314, %v322
    %v326 = vadd.f32 %v315, %v322
    %v327 = vadd.f32 %v316, %v322
    %v328 = vadd.f32 %v317, %v322
    %v329 = vadd.f32 %v318, %v322
    %v330 = vadd.f32 %v319, %v322
    %v331 = vadd.f32 %v320, %v322
    %v332 = vadd.f32 %v321, %v322
    %v333 = vstv %s305
    %v334 = vmul.f32 %v333, %v259
    %v335 = vstv %s306
    %v336 = vadd.f32 %v334, %v335
    %v337 = vstv %s307
    %v338 = vmul.f32 %v337, %v259
    %v339 = vstv %s308
    %v340 = vadd.f32 %v338, %v339
    %v341 = vperm.slane %v336, 0
    %v342 = vmul.f32 %v323, %v341
    %v343 = vmul.f32 %v324, %v341
    %v344 = vmul.f32 %v325, %v341
    %v345 = vmul.f32 %v326, %v341
    %v346 = vmul.f32 %v327, %v341
    %v347 = vmul.f32 %v328, %v341
    %v348 = vmul.f32 %v329, %v341
    %v349 = vmul.f32 %v330, %v341
    %v350 = vmul.f32 %v331, %v341
    %v351 = vmul.f32 %v332, %v341
    %v352 = vadd.f32 %v342, %v41
    %v353 = vadd.f32 %v343, %v42
    %v354 = vadd.f32 %v344, %v43
    %v355 = vadd.f32 %v345, %v44
    %v356 = vadd.f32 %v346, %v45
    %v357 = vadd.f32 %v347, %v46
    %v358 = vadd.f32 %v348, %v47
    %v359 = vadd.f32 %v349, %v48
    %v360 = vadd.f32 %v350, %v49
    %v361 = vadd.f32 %v351, %v50
    %v362 = vsel %vm271, %v352, -inf
    %363 = vmax.xlane.f32.xlu0 %v362
    %v364 = vpop.xlane.xlu0 %363
    %v365 = vsel %vm271, %v353, -inf
    %366 = vmax.xlane.f32.xlu0 %v365
    %v367 = vpop.xlane.xlu0 %366
    %v368 = vsel %vm271, %v354, -inf
    %369 = vmax.xlane.f32.xlu0 %v368
    %v370 = vpop.xlane.xlu0 %369
    %v371 = vsel %vm271, %v355, -inf
    %372 = vmax.xlane.f32.xlu0 %v371
    %v373 = vpop.xlane.xlu0 %372
    %v374 = vsel %vm271, %v356, -inf
    %375 = vmax.xlane.f32.xlu0 %v374
    %v376 = vpop.xlane.xlu0 %375
    %v377 = vsel %vm271, %v357, -inf
    %378 = vmax.xlane.f32.xlu0 %v377
    %v379 = vpop.xlane.xlu0 %378
    %v380 = vsel %vm271, %v358, -inf
    %381 = vmax.xlane.f32.xlu0 %v380
    %v382 = vpop.xlane.xlu0 %381
    %v383 = vsel %vm271, %v359, -inf
    %384 = vmax.xlane.f32.xlu0 %v383
    %v385 = vpop.xlane.xlu0 %384
    %v386 = vsel %vm271, %v360, -inf
    %387 = vmax.xlane.f32.xlu0 %v386
    %v388 = vpop.xlane.xlu0 %387
    %v389 = vsel %vm299, %v361, -inf
    %390 = vmax.xlane.f32.xlu0 %v389
    %v391 = vpop.xlane.xlu0 %390
    %v392 = vsub.f32 %v352, %v364
    %v393 = vsub.f32 %v353, %v367
    %v394 = vsub.f32 %v354, %v370
    %v395 = vsub.f32 %v355, %v373
    %v396 = vsub.f32 %v356, %v376
    %v397 = vsub.f32 %v357, %v379
    %v398 = vsub.f32 %v358, %v382
    %v399 = vsub.f32 %v359, %v385
    %v400 = vsub.f32 %v360, %v388
    %v401 = vsub.f32 %v361, %v391
    %v402 = vmul.f32 %v392, 1.442695
    %v403 = vpow.pop %v402
    %v404 = vmul.f32 %v393, 1.442695
    %v405 = vpow.pop %v404
    %v406 = vmul.f32 %v394, 1.442695
    %v407 = vpow.pop %v406
    %v408 = vmul.f32 %v395, 1.442695
    %v409 = vpow.pop %v408
    %v410 = vmul.f32 %v396, 1.442695
    %v411 = vpow.pop %v410
    %v412 = vmul.f32 %v397, 1.442695
    %v413 = vpow.pop %v412
    %v414 = vmul.f32 %v398, 1.442695
    %v415 = vpow.pop %v414
    %v416 = vmul.f32 %v399, 1.442695
    %v417 = vpow.pop %v416
    %v418 = vmul.f32 %v400, 1.442695
    %v419 = vpow.pop %v418
    %v420 = vmul.f32 %v401, 1.442695
    %v421 = vpow.pop %v420
    %v422 = vsel %vm271, %v403, 0.0
    %423 = vadd.xlane.f32.xlu0 %v422
    %v424 = vpop.xlane.xlu0 %423
    %v425 = vsel %vm271, %v405, 0.0
    %426 = vadd.xlane.f32.xlu0 %v425
    %v427 = vpop.xlane.xlu0 %426
    %v428 = vsel %vm271, %v407, 0.0
    %429 = vadd.xlane.f32.xlu0 %v428
    %v430 = vpop.xlane.xlu0 %429
    %v431 = vsel %vm271, %v409, 0.0
    %432 = vadd.xlane.f32.xlu0 %v431
    %v433 = vpop.xlane.xlu0 %432
    %v434 = vsel %vm271, %v411, 0.0
    %435 = vadd.xlane.f32.xlu0 %v434
    %v436 = vpop.xlane.xlu0 %435
    %v437 = vsel %vm271, %v413, 0.0
    %438 = vadd.xlane.f32.xlu0 %v437
    %v439 = vpop.xlane.xlu0 %438
    %v440 = vsel %vm271, %v415, 0.0
    %441 = vadd.xlane.f32.xlu0 %v440
    %v442 = vpop.xlane.xlu0 %441
    %v443 = vsel %vm271, %v417, 0.0
    %444 = vadd.xlane.f32.xlu0 %v443
    %v445 = vpop.xlane.xlu0 %444
    %v446 = vsel %vm271, %v419, 0.0
    %447 = vadd.xlane.f32.xlu0 %v446
    %v448 = vpop.xlane.xlu0 %447
    %v449 = vsel %vm299, %v421, 0.0
    %450 = vadd.xlane.f32.xlu0 %v449
    %v451 = vpop.xlane.xlu0 %450
    %v452 = vrcp.pop %v424
    %v453 = vrcp.pop %v427
    %v454 = vrcp.pop %v430
    %v455 = vrcp.pop %v433
    %v456 = vrcp.pop %v436
    %v457 = vrcp.pop %v439
    %v458 = vrcp.pop %v442
    %v459 = vrcp.pop %v445
    %v460 = vrcp.pop %v448
    %v461 = vrcp.pop %v451
    %v462 = vmul.f32 %v403, %v452
    %v463 = vmul.f32 %v405, %v453
    %v464 = vmul.f32 %v407, %v454
    %v465 = vmul.f32 %v409, %v455
    %v466 = vmul.f32 %v411, %v456
    %v467 = vmul.f32 %v413, %v457
    %v468 = vmul.f32 %v415, %v458
    %v469 = vmul.f32 %v417, %v459
    %v470 = vmul.f32 %v419, %v460
    %v471 = vmul.f32 %v421, %v461
    %v472 = vperm.slane %v340, 0
    %v473 = vmul.f32 %v462, %v472
    %v474 = vmul.f32 %v463, %v472
    %v475 = vmul.f32 %v464, %v472
    %v476 = vmul.f32 %v465, %v472
    %v477 = vmul.f32 %v466, %v472
    %v478 = vmul.f32 %v467, %v472
    %v479 = vmul.f32 %v468, %v472
    %v480 = vmul.f32 %v469, %v472
    %v481 = vmul.f32 %v470, %v472
    %v482 = vmul.f32 %v471, %v472
    %v483 = vsel %vm271, %v473, 0.0
    %484 = vadd.xlane.f32.xlu0 %v483
    %v485 = vpop.xlane.xlu0 %484
    %v486 = vsel %vm271, %v474, 0.0
    %487 = vadd.xlane.f32.xlu0 %v486
    %v488 = vpop.xlane.xlu0 %487
    %v489 = vsel %vm271, %v475, 0.0
    %490 = vadd.xlane.f32.xlu0 %v489
    %v491 = vpop.xlane.xlu0 %490
    %v492 = vsel %vm271, %v476, 0.0
    %493 = vadd.xlane.f32.xlu0 %v492
    %v494 = vpop.xlane.xlu0 %493
    %v495 = vsel %vm271, %v477, 0.0
    %496 = vadd.xlane.f32.xlu0 %v495
    %v497 = vpop.xlane.xlu0 %496
    %v498 = vsel %vm271, %v478, 0.0
    %499 = vadd.xlane.f32.xlu0 %v498
    %v500 = vpop.xlane.xlu0 %499
    %v501 = vsel %vm271, %v479, 0.0
    %502 = vadd.xlane.f32.xlu0 %v501
    %v503 = vpop.xlane.xlu0 %502
    %v504 = vsel %vm271, %v480, 0.0
    %505 = vadd.xlane.f32.xlu0 %v504
    %v506 = vpop.xlane.xlu0 %505
    %v507 = vsel %vm271, %v481, 0.0
    %508 = vadd.xlane.f32.xlu0 %v507
    %v509 = vpop.xlane.xlu0 %508
    %v510 = vsel %vm299, %v482, 0.0
    %511 = vadd.xlane.f32.xlu0 %v510
    %v512 = vpop.xlane.xlu0 %511
    %v513 = vstv %s309
    %v514 = vmul.f32 %v513, %v274
    %v515 = vmul.f32 %v513, %v277
    %v516 = vmul.f32 %v513, %v280
    %v517 = vmul.f32 %v513, %v283
    %v518 = vmul.f32 %v513, %v286
    %v519 = vmul.f32 %v513, %v289
    %v520 = vmul.f32 %v513, %v292
    %v521 = vmul.f32 %v513, %v295
    %v522 = vmul.f32 %v513, %v298
    %v523 = vmul.f32 %v513, %v302
    %v524 = vstv %s310
    %v525 = vadd.f32 %v514, %v524
    %v526 = vadd.f32 %v515, %v524
    %v527 = vadd.f32 %v516, %v524
    %v528 = vadd.f32 %v517, %v524
    %v529 = vadd.f32 %v518, %v524
    %v530 = vadd.f32 %v519, %v524
    %v531 = vadd.f32 %v520, %v524
    %v532 = vadd.f32 %v521, %v524
    %v533 = vadd.f32 %v522, %v524
    %v534 = vadd.f32 %v523, %v524
    %v535 = vadd.f32 %v485, %v525
    %v536 = vadd.f32 %v488, %v526
    %v537 = vadd.f32 %v491, %v527
    %v538 = vadd.f32 %v494, %v528
    %v539 = vadd.f32 %v497, %v529
    %v540 = vadd.f32 %v500, %v530
    %v541 = vadd.f32 %v503, %v531
    %v542 = vadd.f32 %v506, %v532
    %v543 = vadd.f32 %v509, %v533
    %v544 = vadd.f32 %v512, %v534
    %vm545 = vcmp.gt.f32.partialorder %v535, 0.0
    %vm546 = vcmp.gt.f32.partialorder %v536, 0.0
    %vm547 = vcmp.gt.f32.partialorder %v537, 0.0
    %vm548 = vcmp.gt.f32.partialorder %v538, 0.0
    %vm549 = vcmp.gt.f32.partialorder %v539, 0.0
    %vm550 = vcmp.gt.f32.partialorder %v540, 0.0
    %vm551 = vcmp.gt.f32.partialorder %v541, 0.0
    %vm552 = vcmp.gt.f32.partialorder %v542, 0.0
    %vm553 = vcmp.gt.f32.partialorder %v543, 0.0
    %vm554 = vcmp.gt.f32.partialorder %v544, 0.0
    %v555 = vmul.f32 %v535, 0.01
    %v556 = vmul.f32 %v536, 0.01
    %v557 = vmul.f32 %v537, 0.01
    %v558 = vmul.f32 %v538, 0.01
    %v559 = vmul.f32 %v539, 0.01
    %v560 = vmul.f32 %v540, 0.01
    %v561 = vmul.f32 %v541, 0.01
    %v562 = vmul.f32 %v542, 0.01
    %v563 = vmul.f32 %v543, 0.01
    %v564 = vmul.f32 %v544, 0.01
    %v565 = vsel %vm545, %v535, %v555
    %v566 = vsel %vm546, %v536, %v556
    %v567 = vsel %vm547, %v537, %v557
    %v568 = vsel %vm548, %v538, %v558
    %v569 = vsel %vm549, %v539, %v559
    %v570 = vsel %vm550, %v540, %v560
    %v571 = vsel %vm551, %v541, %v561
    %v572 = vsel %vm552, %v542, %v562
    %v573 = vsel %vm553, %v543, %v563
    %v574 = vsel %vm554, %v544, %v564
    %s575 = sld [smem:[#allocation2 + $0x1]]
    %s576 = sld [smem:[#allocation2 + $0x5]]
    %s577 = sld [smem:[#allocation2 + $0x9]]
    %s578 = sld [smem:[#allocation2 + $0xd]]
    %s579 = sld [smem:[#allocation2 + $0x11]]
    %s580 = sld [smem:[#allocation2 + $0x15]]
    %s581 = sld [smem:[#allocation2 + $0x19]]
    %s582 = sld [smem:[#allocation2 + $0x1d]]
    %v583 = vstv %s575
    %v584 = vmul.f32 %v583, %v274
    %v585 = vmul.f32 %v583, %v277
    %v586 = vmul.f32 %v583, %v280
    %v587 = vmul.f32 %v583, %v283
    %v588 = vmul.f32 %v583, %v286
    %v589 = vmul.f32 %v583, %v289
    %v590 = vmul.f32 %v583, %v292
    %v591 = vmul.f32 %v583, %v295
    %v592 = vmul.f32 %v583, %v298
    %v593 = vmul.f32 %v583, %v302
    %v594 = vstv %s576
    %v595 = vadd.f32 %v584, %v594
    %v596 = vadd.f32 %v585, %v594
    %v597 = vadd.f32 %v586, %v594
    %v598 = vadd.f32 %v587, %v594
    %v599 = vadd.f32 %v588, %v594
    %v600 = vadd.f32 %v589, %v594
    %v601 = vadd.f32 %v590, %v594
    %v602 = vadd.f32 %v591, %v594
    %v603 = vadd.f32 %v592, %v594
    %v604 = vadd.f32 %v593, %v594
    %v605 = vstv %s577
    %v606 = vmul.f32 %v605, %v259
    %v607 = vstv %s578
    %v608 = vadd.f32 %v606, %v607
    %v609 = vstv %s579
    %v610 = vmul.f32 %v609, %v259
    %v611 = vstv %s580
    %v612 = vadd.f32 %v610, %v611
    %v613 = vperm.slane %v608, 0
    %v614 = vmul.f32 %v595, %v613
    %v615 = vmul.f32 %v596, %v613
    %v616 = vmul.f32 %v597, %v613
    %v617 = vmul.f32 %v598, %v613
    %v618 = vmul.f32 %v599, %v613
    %v619 = vmul.f32 %v600, %v613
    %v620 = vmul.f32 %v601, %v613
    %v621 = vmul.f32 %v602, %v613
    %v622 = vmul.f32 %v603, %v613
    %v623 = vmul.f32 %v604, %v613
    %v624 = vadd.f32 %v614, %v41
    %v625 = vadd.f32 %v615, %v42
    %v626 = vadd.f32 %v616, %v43
    %v627 = vadd.f32 %v617, %v44
    %v628 = vadd.f32 %v618, %v45
    %v629 = vadd.f32 %v619, %v46
    %v630 = vadd.f32 %v620, %v47
    %v631 = vadd.f32 %v621, %v48
    %v632 = vadd.f32 %v622, %v49
    %v633 = vadd.f32 %v623, %v50
    %v634 = vsel %vm271, %v624, -inf
    %635 = vmax.xlane.f32.xlu0 %v634
    %v636 = vpop.xlane.xlu0 %635
    %v637 = vsel %vm271, %v625, -inf
    %638 = vmax.xlane.f32.xlu0 %v637
    %v639 = vpop.xlane.xlu0 %638
    %v640 = vsel %vm271, %v626, -inf
    %641 = vmax.xlane.f32.xlu0 %v640
    %v642 = vpop.xlane.xlu0 %641
    %v643 = vsel %vm271, %v627, -inf
    %644 = vmax.xlane.f32.xlu0 %v643
    %v645 = vpop.xlane.xlu0 %644
    %v646 = vsel %vm271, %v628, -inf
    %647 = vmax.xlane.f32.xlu0 %v646
    %v648 = vpop.xlane.xlu0 %647
    %v649 = vsel %vm271, %v629, -inf
    %650 = vmax.xlane.f32.xlu0 %v649
    %v651 = vpop.xlane.xlu0 %650
    %v652 = vsel %vm271, %v630, -inf
    %653 = vmax.xlane.f32.xlu0 %v652
    %v654 = vpop.xlane.xlu0 %653
    %v655 = vsel %vm271, %v631, -inf
    %656 = vmax.xlane.f32.xlu0 %v655
    %v657 = vpop.xlane.xlu0 %656
    %v658 = vsel %vm271, %v632, -inf
    %659 = vmax.xlane.f32.xlu0 %v658
    %v660 = vpop.xlane.xlu0 %659
    %v661 = vsel %vm299, %v633, -inf
    %662 = vmax.xlane.f32.xlu0 %v661
    %v663 = vpop.xlane.xlu0 %662
    %v664 = vsub.f32 %v624, %v636
    %v665 = vsub.f32 %v625, %v639
    %v666 = vsub.f32 %v626, %v642
    %v667 = vsub.f32 %v627, %v645
    %v668 = vsub.f32 %v628, %v648
    %v669 = vsub.f32 %v629, %v651
    %v670 = vsub.f32 %v630, %v654
    %v671 = vsub.f32 %v631, %v657
    %v672 = vsub.f32 %v632, %v660
    %v673 = vsub.f32 %v633, %v663
    %v674 = vmul.f32 %v664, 1.442695
    %v675 = vpow.pop %v674
    %v676 = vmul.f32 %v665, 1.442695
    %v677 = vpow.pop %v676
    %v678 = vmul.f32 %v666, 1.442695
    %v679 = vpow.pop %v678
    %v680 = vmul.f32 %v667, 1.442695
    %v681 = vpow.pop %v680
    %v682 = vmul.f32 %v668, 1.442695
    %v683 = vpow.pop %v682
    %v684 = vmul.f32 %v669, 1.442695
    %v685 = vpow.pop %v684
    %v686 = vmul.f32 %v670, 1.442695
    %v687 = vpow.pop %v686
    %v688 = vmul.f32 %v671, 1.442695
    %v689 = vpow.pop %v688
    %v690 = vmul.f32 %v672, 1.442695
    %v691 = vpow.pop %v690
    %v692 = vmul.f32 %v673, 1.442695
    %v693 = vpow.pop %v692
    %v694 = vsel %vm271, %v675, 0.0
    %695 = vadd.xlane.f32.xlu0 %v694
    %v696 = vpop.xlane.xlu0 %695
    %v697 = vsel %vm271, %v677, 0.0
    %698 = vadd.xlane.f32.xlu0 %v697
    %v699 = vpop.xlane.xlu0 %698
    %v700 = vsel %vm271, %v679, 0.0
    %701 = vadd.xlane.f32.xlu0 %v700
    %v702 = vpop.xlane.xlu0 %701
    %v703 = vsel %vm271, %v681, 0.0
    %704 = vadd.xlane.f32.xlu0 %v703
    %v705 = vpop.xlane.xlu0 %704
    %v706 = vsel %vm271, %v683, 0.0
    %707 = vadd.xlane.f32.xlu0 %v706
    %v708 = vpop.xlane.xlu0 %707
    %v709 = vsel %vm271, %v685, 0.0
    %710 = vadd.xlane.f32.xlu0 %v709
    %v711 = vpop.xlane.xlu0 %710
    %v712 = vsel %vm271, %v687, 0.0
    %713 = vadd.xlane.f32.xlu0 %v712
    %v714 = vpop.xlane.xlu0 %713
    %v715 = vsel %vm271, %v689, 0.0
    %716 = vadd.xlane.f32.xlu0 %v715
    %v717 = vpop.xlane.xlu0 %716
    %v718 = vsel %vm271, %v691, 0.0
    %719 = vadd.xlane.f32.xlu0 %v718
    %v720 = vpop.xlane.xlu0 %719
    %v721 = vsel %vm299, %v693, 0.0
    %722 = vadd.xlane.f32.xlu0 %v721
    %v723 = vpop.xlane.xlu0 %722
    %v724 = vrcp.pop %v696
    %v725 = vrcp.pop %v699
    %v726 = vrcp.pop %v702
    %v727 = vrcp.pop %v705
    %v728 = vrcp.pop %v708
    %v729 = vrcp.pop %v711
    %v730 = vrcp.pop %v714
    %v731 = vrcp.pop %v717
    %v732 = vrcp.pop %v720
    %v733 = vrcp.pop %v723
    %v734 = vmul.f32 %v675, %v724
    %v735 = vmul.f32 %v677, %v725
    %v736 = vmul.f32 %v679, %v726
    %v737 = vmul.f32 %v681, %v727
    %v738 = vmul.f32 %v683, %v728
    %v739 = vmul.f32 %v685, %v729
    %v740 = vmul.f32 %v687, %v730
    %v741 = vmul.f32 %v689, %v731
    %v742 = vmul.f32 %v691, %v732
    %v743 = vmul.f32 %v693, %v733
    %v744 = vperm.slane %v612, 0
    %v745 = vmul.f32 %v734, %v744
    %v746 = vmul.f32 %v735, %v744
    %v747 = vmul.f32 %v736, %v744
    %v748 = vmul.f32 %v737, %v744
    %v749 = vmul.f32 %v738, %v744
    %v750 = vmul.f32 %v739, %v744
    %v751 = vmul.f32 %v740, %v744
    %v752 = vmul.f32 %v741, %v744
    %v753 = vmul.f32 %v742, %v744
    %v754 = vmul.f32 %v743, %v744
    %v755 = vsel %vm271, %v745, 0.0
    %756 = vadd.xlane.f32.xlu0 %v755
    %v757 = vpop.xlane.xlu0 %756
    %v758 = vsel %vm271, %v746, 0.0
    %759 = vadd.xlane.f32.xlu0 %v758
    %v760 = vpop.xlane.xlu0 %759
    %v761 = vsel %vm271, %v747, 0.0
    %762 = vadd.xlane.f32.xlu0 %v761
    %v763 = vpop.xlane.xlu0 %762
    %v764 = vsel %vm271, %v748, 0.0
    %765 = vadd.xlane.f32.xlu0 %v764
    %v766 = vpop.xlane.xlu0 %765
    %v767 = vsel %vm271, %v749, 0.0
    %768 = vadd.xlane.f32.xlu0 %v767
    %v769 = vpop.xlane.xlu0 %768
    %v770 = vsel %vm271, %v750, 0.0
    %771 = vadd.xlane.f32.xlu0 %v770
    %v772 = vpop.xlane.xlu0 %771
    %v773 = vsel %vm271, %v751, 0.0
    %774 = vadd.xlane.f32.xlu0 %v773
    %v775 = vpop.xlane.xlu0 %774
    %v776 = vsel %vm271, %v752, 0.0
    %777 = vadd.xlane.f32.xlu0 %v776
    %v778 = vpop.xlane.xlu0 %777
    %v779 = vsel %vm271, %v753, 0.0
    %780 = vadd.xlane.f32.xlu0 %v779
    %v781 = vpop.xlane.xlu0 %780
    %v782 = vsel %vm299, %v754, 0.0
    %783 = vadd.xlane.f32.xlu0 %v782
    %v784 = vpop.xlane.xlu0 %783
    %v785 = vstv %s581
    %v786 = vmul.f32 %v785, %v274
    %v787 = vmul.f32 %v785, %v277
    %v788 = vmul.f32 %v785, %v280
    %v789 = vmul.f32 %v785, %v283
    %v790 = vmul.f32 %v785, %v286
    %v791 = vmul.f32 %v785, %v289
    %v792 = vmul.f32 %v785, %v292
    %v793 = vmul.f32 %v785, %v295
    %v794 = vmul.f32 %v785, %v298
    %v795 = vmul.f32 %v785, %v302
    %v796 = vstv %s582
    %v797 = vadd.f32 %v786, %v796
    %v798 = vadd.f32 %v787, %v796
    %v799 = vadd.f32 %v788, %v796
    %v800 = vadd.f32 %v789, %v796
    %v801 = vadd.f32 %v790, %v796
    %v802 = vadd.f32 %v791, %v796
    %v803 = vadd.f32 %v792, %v796
    %v804 = vadd.f32 %v793, %v796
    %v805 = vadd.f32 %v794, %v796
    %v806 = vadd.f32 %v795, %v796
    %v807 = vadd.f32 %v757, %v797
    %v808 = vadd.f32 %v760, %v798
    %v809 = vadd.f32 %v763, %v799
    %v810 = vadd.f32 %v766, %v800
    %v811 = vadd.f32 %v769, %v801
    %v812 = vadd.f32 %v772, %v802
    %v813 = vadd.f32 %v775, %v803
    %v814 = vadd.f32 %v778, %v804
    %v815 = vadd.f32 %v781, %v805
    %v816 = vadd.f32 %v784, %v806
    %vm817 = vcmp.gt.f32.partialorder %v807, 0.0
    %vm818 = vcmp.gt.f32.partialorder %v808, 0.0
    %vm819 = vcmp.gt.f32.partialorder %v809, 0.0
    %vm820 = vcmp.gt.f32.partialorder %v810, 0.0
    %vm821 = vcmp.gt.f32.partialorder %v811, 0.0
    %vm822 = vcmp.gt.f32.partialorder %v812, 0.0
    %vm823 = vcmp.gt.f32.partialorder %v813, 0.0
    %vm824 = vcmp.gt.f32.partialorder %v814, 0.0
    %vm825 = vcmp.gt.f32.partialorder %v815, 0.0
    %vm826 = vcmp.gt.f32.partialorder %v816, 0.0
    %v827 = vmul.f32 %v807, 0.01
    %v828 = vmul.f32 %v808, 0.01
    %v829 = vmul.f32 %v809, 0.01
    %v830 = vmul.f32 %v810, 0.01
    %v831 = vmul.f32 %v811, 0.01
    %v832 = vmul.f32 %v812, 0.01
    %v833 = vmul.f32 %v813, 0.01
    %v834 = vmul.f32 %v814, 0.01
    %v835 = vmul.f32 %v815, 0.01
    %v836 = vmul.f32 %v816, 0.01
    %v837 = vsel %vm817, %v807, %v827
    %v838 = vsel %vm818, %v808, %v828
    %v839 = vsel %vm819, %v809, %v829
    %v840 = vsel %vm820, %v810, %v830
    %v841 = vsel %vm821, %v811, %v831
    %v842 = vsel %vm822, %v812, %v832
    %v843 = vsel %vm823, %v813, %v833
    %v844 = vsel %vm824, %v814, %v834
    %v845 = vsel %vm825, %v815, %v835
    %v846 = vsel %vm826, %v816, %v836
    %s847 = sld [smem:[#allocation2 + $0x2]]
    %s848 = sld [smem:[#allocation2 + $0x6]]
    %s849 = sld [smem:[#allocation2 + $0xa]]
    %s850 = sld [smem:[#allocation2 + $0xe]]
    %s851 = sld [smem:[#allocation2 + $0x12]]
    %s852 = sld [smem:[#allocation2 + $0x16]]
    %s853 = sld [smem:[#allocation2 + $0x1a]]
    %s854 = sld [smem:[#allocation2 + $0x1e]]
    %v855 = vstv %s847
    %v856 = vmul.f32 %v855, %v274
    %v857 = vmul.f32 %v855, %v277
    %v858 = vmul.f32 %v855, %v280
    %v859 = vmul.f32 %v855, %v283
    %v860 = vmul.f32 %v855, %v286
    %v861 = vmul.f32 %v855, %v289
    %v862 = vmul.f32 %v855, %v292
    %v863 = vmul.f32 %v855, %v295
    %v864 = vmul.f32 %v855, %v298
    %v865 = vmul.f32 %v855, %v302
    %v866 = vstv %s848
    %v867 = vadd.f32 %v856, %v866
    %v868 = vadd.f32 %v857, %v866
    %v869 = vadd.f32 %v858, %v866
    %v870 = vadd.f32 %v859, %v866
    %v871 = vadd.f32 %v860, %v866
    %v872 = vadd.f32 %v861, %v866
    %v873 = vadd.f32 %v862, %v866
    %v874 = vadd.f32 %v863, %v866
    %v875 = vadd.f32 %v864, %v866
    %v876 = vadd.f32 %v865, %v866
    %v877 = vstv %s849
    %v878 = vmul.f32 %v877, %v259
    %v879 = vstv %s850
    %v880 = vadd.f32 %v878, %v879
    %v881 = vstv %s851
    %v882 = vmul.f32 %v881, %v259
    %v883 = vstv %s852
    %v884 = vadd.f32 %v882, %v883
    %v885 = vperm.slane %v880, 0
    %v886 = vmul.f32 %v867, %v885
    %v887 = vmul.f32 %v868, %v885
    %v888 = vmul.f32 %v869, %v885
    %v889 = vmul.f32 %v870, %v885
    %v890 = vmul.f32 %v871, %v885
    %v891 = vmul.f32 %v872, %v885
    %v892 = vmul.f32 %v873, %v885
    %v893 = vmul.f32 %v874, %v885
    %v894 = vmul.f32 %v875, %v885
    %v895 = vmul.f32 %v876, %v885
    %v896 = vadd.f32 %v886, %v41
    %v897 = vadd.f32 %v887, %v42
    %v898 = vadd.f32 %v888, %v43
    %v899 = vadd.f32 %v889, %v44
    %v900 = vadd.f32 %v890, %v45
    %v901 = vadd.f32 %v891, %v46
    %v902 = vadd.f32 %v892, %v47
    %v903 = vadd.f32 %v893, %v48
    %v904 = vadd.f32 %v894, %v49
    %v905 = vadd.f32 %v895, %v50
    %v906 = vsel %vm271, %v896, -inf
    %907 = vmax.xlane.f32.xlu0 %v906
    %v908 = vpop.xlane.xlu0 %907
    %v909 = vsel %vm271, %v897, -inf
    %910 = vmax.xlane.f32.xlu0 %v909
    %v911 = vpop.xlane.xlu0 %910
    %v912 = vsel %vm271, %v898, -inf
    %913 = vmax.xlane.f32.xlu0 %v912
    %v914 = vpop.xlane.xlu0 %913
    %v915 = vsel %vm271, %v899, -inf
    %916 = vmax.xlane.f32.xlu0 %v915
    %v917 = vpop.xlane.xlu0 %916
    %v918 = vsel %vm271, %v900, -inf
    %919 = vmax.xlane.f32.xlu0 %v918
    %v920 = vpop.xlane.xlu0 %919
    %v921 = vsel %vm271, %v901, -inf
    %922 = vmax.xlane.f32.xlu0 %v921
    %v923 = vpop.xlane.xlu0 %922
    %v924 = vsel %vm271, %v902, -inf
    %925 = vmax.xlane.f32.xlu0 %v924
    %v926 = vpop.xlane.xlu0 %925
    %v927 = vsel %vm271, %v903, -inf
    %928 = vmax.xlane.f32.xlu0 %v927
    %v929 = vpop.xlane.xlu0 %928
    %v930 = vsel %vm271, %v904, -inf
    %931 = vmax.xlane.f32.xlu0 %v930
    %v932 = vpop.xlane.xlu0 %931
    %v933 = vsel %vm299, %v905, -inf
    %934 = vmax.xlane.f32.xlu0 %v933
    %v935 = vpop.xlane.xlu0 %934
    %v936 = vsub.f32 %v896, %v908
    %v937 = vsub.f32 %v897, %v911
    %v938 = vsub.f32 %v898, %v914
    %v939 = vsub.f32 %v899, %v917
    %v940 = vsub.f32 %v900, %v920
    %v941 = vsub.f32 %v901, %v923
    %v942 = vsub.f32 %v902, %v926
    %v943 = vsub.f32 %v903, %v929
    %v944 = vsub.f32 %v904, %v932
    %v945 = vsub.f32 %v905, %v935
    %v946 = vmul.f32 %v936, 1.442695
    %v947 = vpow.pop %v946
    %v948 = vmul.f32 %v937, 1.442695
    %v949 = vpow.pop %v948
    %v950 = vmul.f32 %v938, 1.442695
    %v951 = vpow.pop %v950
    %v952 = vmul.f32 %v939, 1.442695
    %v953 = vpow.pop %v952
    %v954 = vmul.f32 %v940, 1.442695
    %v955 = vpow.pop %v954
    %v956 = vmul.f32 %v941, 1.442695
    %v957 = vpow.pop %v956
    %v958 = vmul.f32 %v942, 1.442695
    %v959 = vpow.pop %v958
    %v960 = vmul.f32 %v943, 1.442695
    %v961 = vpow.pop %v960
    %v962 = vmul.f32 %v944, 1.442695
    %v963 = vpow.pop %v962
    %v964 = vmul.f32 %v945, 1.442695
    %v965 = vpow.pop %v964
    %v966 = vsel %vm271, %v947, 0.0
    %967 = vadd.xlane.f32.xlu0 %v966
    %v968 = vpop.xlane.xlu0 %967
    %v969 = vsel %vm271, %v949, 0.0
    %970 = vadd.xlane.f32.xlu0 %v969
    %v971 = vpop.xlane.xlu0 %970
    %v972 = vsel %vm271, %v951, 0.0
    %973 = vadd.xlane.f32.xlu0 %v972
    %v974 = vpop.xlane.xlu0 %973
    %v975 = vsel %vm271, %v953, 0.0
    %976 = vadd.xlane.f32.xlu0 %v975
    %v977 = vpop.xlane.xlu0 %976
    %v978 = vsel %vm271, %v955, 0.0
    %979 = vadd.xlane.f32.xlu0 %v978
    %v980 = vpop.xlane.xlu0 %979
    %v981 = vsel %vm271, %v957, 0.0
    %982 = vadd.xlane.f32.xlu0 %v981
    %v983 = vpop.xlane.xlu0 %982
    %v984 = vsel %vm271, %v959, 0.0
    %985 = vadd.xlane.f32.xlu0 %v984
    %v986 = vpop.xlane.xlu0 %985
    %v987 = vsel %vm271, %v961, 0.0
    %988 = vadd.xlane.f32.xlu0 %v987
    %v989 = vpop.xlane.xlu0 %988
    %v990 = vsel %vm271, %v963, 0.0
    %991 = vadd.xlane.f32.xlu0 %v990
    %v992 = vpop.xlane.xlu0 %991
    %v993 = vsel %vm299, %v965, 0.0
    %994 = vadd.xlane.f32.xlu0 %v993
    %v995 = vpop.xlane.xlu0 %994
    %v996 = vrcp.pop %v968
    %v997 = vrcp.pop %v971
    %v998 = vrcp.pop %v974
    %v999 = vrcp.pop %v977
    %v1000 = vrcp.pop %v980
    %v1001 = vrcp.pop %v983
    %v1002 = vrcp.pop %v986
    %v1003 = vrcp.pop %v989
    %v1004 = vrcp.pop %v992
    %v1005 = vrcp.pop %v995
    %v1006 = vmul.f32 %v947, %v996
    %v1007 = vmul.f32 %v949, %v997
    %v1008 = vmul.f32 %v951, %v998
    %v1009 = vmul.f32 %v953, %v999
    %v1010 = vmul.f32 %v955, %v1000
    %v1011 = vmul.f32 %v957, %v1001
    %v1012 = vmul.f32 %v959, %v1002
    %v1013 = vmul.f32 %v961, %v1003
    %v1014 = vmul.f32 %v963, %v1004
    %v1015 = vmul.f32 %v965, %v1005
    %v1016 = vperm.slane %v884, 0
    %v1017 = vmul.f32 %v1006, %v1016
    %v1018 = vmul.f32 %v1007, %v1016
    %v1019 = vmul.f32 %v1008, %v1016
    %v1020 = vmul.f32 %v1009, %v1016
    %v1021 = vmul.f32 %v1010, %v1016
    %v1022 = vmul.f32 %v1011, %v1016
    %v1023 = vmul.f32 %v1012, %v1016
    %v1024 = vmul.f32 %v1013, %v1016
    %v1025 = vmul.f32 %v1014, %v1016
    %v1026 = vmul.f32 %v1015, %v1016
    %v1027 = vsel %vm271, %v1017, 0.0
    %1028 = vadd.xlane.f32.xlu0 %v1027
    %v1029 = vpop.xlane.xlu0 %1028
    %v1030 = vsel %vm271, %v1018, 0.0
    %1031 = vadd.xlane.f32.xlu0 %v1030
    %v1032 = vpop.xlane.xlu0 %1031
    %v1033 = vsel %vm271, %v1019, 0.0
    %1034 = vadd.xlane.f32.xlu0 %v1033
    %v1035 = vpop.xlane.xlu0 %1034
    %v1036 = vsel %vm271, %v1020, 0.0
    %1037 = vadd.xlane.f32.xlu0 %v1036
    %v1038 = vpop.xlane.xlu0 %1037
    %v1039 = vsel %vm271, %v1021, 0.0
    %1040 = vadd.xlane.f32.xlu0 %v1039
    %v1041 = vpop.xlane.xlu0 %1040
    %v1042 = vsel %vm271, %v1022, 0.0
    %1043 = vadd.xlane.f32.xlu0 %v1042
    %v1044 = vpop.xlane.xlu0 %1043
    %v1045 = vsel %vm271, %v1023, 0.0
    %1046 = vadd.xlane.f32.xlu0 %v1045
    %v1047 = vpop.xlane.xlu0 %1046
    %v1048 = vsel %vm271, %v1024, 0.0
    %1049 = vadd.xlane.f32.xlu0 %v1048
    %v1050 = vpop.xlane.xlu0 %1049
    %v1051 = vsel %vm271, %v1025, 0.0
    %1052 = vadd.xlane.f32.xlu0 %v1051
    %v1053 = vpop.xlane.xlu0 %1052
    %v1054 = vsel %vm299, %v1026, 0.0
    %1055 = vadd.xlane.f32.xlu0 %v1054
    %v1056 = vpop.xlane.xlu0 %1055
    %v1057 = vstv %s853
    %v1058 = vmul.f32 %v1057, %v274
    %v1059 = vmul.f32 %v1057, %v277
    %v1060 = vmul.f32 %v1057, %v280
    %v1061 = vmul.f32 %v1057, %v283
    %v1062 = vmul.f32 %v1057, %v286
    %v1063 = vmul.f32 %v1057, %v289
    %v1064 = vmul.f32 %v1057, %v292
    %v1065 = vmul.f32 %v1057, %v295
    %v1066 = vmul.f32 %v1057, %v298
    %v1067 = vmul.f32 %v1057, %v302
    %v1068 = vstv %s854
    %v1069 = vadd.f32 %v1058, %v1068
    %v1070 = vadd.f32 %v1059, %v1068
    %v1071 = vadd.f32 %v1060, %v1068
    %v1072 = vadd.f32 %v1061, %v1068
    %v1073 = vadd.f32 %v1062, %v1068
    %v1074 = vadd.f32 %v1063, %v1068
    %v1075 = vadd.f32 %v1064, %v1068
    %v1076 = vadd.f32 %v1065, %v1068
    %v1077 = vadd.f32 %v1066, %v1068
    %v1078 = vadd.f32 %v1067, %v1068
    %v1079 = vadd.f32 %v1029, %v1069
    %v1080 = vadd.f32 %v1032, %v1070
    %v1081 = vadd.f32 %v1035, %v1071
    %v1082 = vadd.f32 %v1038, %v1072
    %v1083 = vadd.f32 %v1041, %v1073
    %v1084 = vadd.f32 %v1044, %v1074
    %v1085 = vadd.f32 %v1047, %v1075
    %v1086 = vadd.f32 %v1050, %v1076
    %v1087 = vadd.f32 %v1053, %v1077
    %v1088 = vadd.f32 %v1056, %v1078
    %vm1089 = vcmp.gt.f32.partialorder %v1079, 0.0
    %vm1090 = vcmp.gt.f32.partialorder %v1080, 0.0
    %vm1091 = vcmp.gt.f32.partialorder %v1081, 0.0
    %vm1092 = vcmp.gt.f32.partialorder %v1082, 0.0
    %vm1093 = vcmp.gt.f32.partialorder %v1083, 0.0
    %vm1094 = vcmp.gt.f32.partialorder %v1084, 0.0
    %vm1095 = vcmp.gt.f32.partialorder %v1085, 0.0
    %vm1096 = vcmp.gt.f32.partialorder %v1086, 0.0
    %vm1097 = vcmp.gt.f32.partialorder %v1087, 0.0
    %vm1098 = vcmp.gt.f32.partialorder %v1088, 0.0
    %v1099 = vmul.f32 %v1079, 0.01
    %v1100 = vmul.f32 %v1080, 0.01
    %v1101 = vmul.f32 %v1081, 0.01
    %v1102 = vmul.f32 %v1082, 0.01
    %v1103 = vmul.f32 %v1083, 0.01
    %v1104 = vmul.f32 %v1084, 0.01
    %v1105 = vmul.f32 %v1085, 0.01
    %v1106 = vmul.f32 %v1086, 0.01
    %v1107 = vmul.f32 %v1087, 0.01
    %v1108 = vmul.f32 %v1088, 0.01
    %v1109 = vsel %vm1089, %v1079, %v1099
    %v1110 = vsel %vm1090, %v1080, %v1100
    %v1111 = vsel %vm1091, %v1081, %v1101
    %v1112 = vsel %vm1092, %v1082, %v1102
    %v1113 = vsel %vm1093, %v1083, %v1103
    %v1114 = vsel %vm1094, %v1084, %v1104
    %v1115 = vsel %vm1095, %v1085, %v1105
    %v1116 = vsel %vm1096, %v1086, %v1106
    %v1117 = vsel %vm1097, %v1087, %v1107
    %v1118 = vsel %vm1098, %v1088, %v1108
    %s1119 = sld [smem:[#allocation2 + $0x3]]
    %s1120 = sld [smem:[#allocation2 + $0x7]]
    %s1121 = sld [smem:[#allocation2 + $0xb]]
    %s1122 = sld [smem:[#allocation2 + $0xf]]
    %s1123 = sld [smem:[#allocation2 + $0x13]]
    %s1124 = sld [smem:[#allocation2 + $0x17]]
    %s1125 = sld [smem:[#allocation2 + $0x1b]]
    %s1126 = sld [smem:[#allocation2 + $0x1f]]
    %v1127 = vstv %s1119
    %v1128 = vmul.f32 %v1127, %v274
    %v1129 = vmul.f32 %v1127, %v277
    %v1130 = vmul.f32 %v1127, %v280
    %v1131 = vmul.f32 %v1127, %v283
    %v1132 = vmul.f32 %v1127, %v286
    %v1133 = vmul.f32 %v1127, %v289
    %v1134 = vmul.f32 %v1127, %v292
    %v1135 = vmul.f32 %v1127, %v295
    %v1136 = vmul.f32 %v1127, %v298
    %v1137 = vmul.f32 %v1127, %v302
    %v1138 = vstv %s1120
    %v1139 = vadd.f32 %v1128, %v1138
    %v1140 = vadd.f32 %v1129, %v1138
    %v1141 = vadd.f32 %v1130, %v1138
    %v1142 = vadd.f32 %v1131, %v1138
    %v1143 = vadd.f32 %v1132, %v1138
    %v1144 = vadd.f32 %v1133, %v1138
    %v1145 = vadd.f32 %v1134, %v1138
    %v1146 = vadd.f32 %v1135, %v1138
    %v1147 = vadd.f32 %v1136, %v1138
    %v1148 = vadd.f32 %v1137, %v1138
    %v1149 = vstv %s1121
    %v1150 = vmul.f32 %v1149, %v259
    %v1151 = vstv %s1122
    %v1152 = vadd.f32 %v1150, %v1151
    %v1153 = vstv %s1123
    %v1154 = vmul.f32 %v1153, %v259
    %v1155 = vstv %s1124
    %v1156 = vadd.f32 %v1154, %v1155
    %v1157 = vperm.slane %v1152, 0
    %v1158 = vmul.f32 %v1139, %v1157
    %v1159 = vmul.f32 %v1140, %v1157
    %v1160 = vmul.f32 %v1141, %v1157
    %v1161 = vmul.f32 %v1142, %v1157
    %v1162 = vmul.f32 %v1143, %v1157
    %v1163 = vmul.f32 %v1144, %v1157
    %v1164 = vmul.f32 %v1145, %v1157
    %v1165 = vmul.f32 %v1146, %v1157
    %v1166 = vmul.f32 %v1147, %v1157
    %v1167 = vmul.f32 %v1148, %v1157
    %v1168 = vadd.f32 %v1158, %v41
    %v1169 = vadd.f32 %v1159, %v42
    %v1170 = vadd.f32 %v1160, %v43
    %v1171 = vadd.f32 %v1161, %v44
    %v1172 = vadd.f32 %v1162, %v45
    %v1173 = vadd.f32 %v1163, %v46
    %v1174 = vadd.f32 %v1164, %v47
    %v1175 = vadd.f32 %v1165, %v48
    %v1176 = vadd.f32 %v1166, %v49
    %v1177 = vadd.f32 %v1167, %v50
    %v1178 = vsel %vm271, %v1168, -inf
    %1179 = vmax.xlane.f32.xlu0 %v1178
    %v1180 = vpop.xlane.xlu0 %1179
    %v1181 = vsel %vm271, %v1169, -inf
    %1182 = vmax.xlane.f32.xlu0 %v1181
    %v1183 = vpop.xlane.xlu0 %1182
    %v1184 = vsel %vm271, %v1170, -inf
    %1185 = vmax.xlane.f32.xlu0 %v1184
    %v1186 = vpop.xlane.xlu0 %1185
    %v1187 = vsel %vm271, %v1171, -inf
    %1188 = vmax.xlane.f32.xlu0 %v1187
    %v1189 = vpop.xlane.xlu0 %1188
    %v1190 = vsel %vm271, %v1172, -inf
    %1191 = vmax.xlane.f32.xlu0 %v1190
    %v1192 = vpop.xlane.xlu0 %1191
    %v1193 = vsel %vm271, %v1173, -inf
    %1194 = vmax.xlane.f32.xlu0 %v1193
    %v1195 = vpop.xlane.xlu0 %1194
    %v1196 = vsel %vm271, %v1174, -inf
    %1197 = vmax.xlane.f32.xlu0 %v1196
    %v1198 = vpop.xlane.xlu0 %1197
    %v1199 = vsel %vm271, %v1175, -inf
    %1200 = vmax.xlane.f32.xlu0 %v1199
    %v1201 = vpop.xlane.xlu0 %1200
    %v1202 = vsel %vm271, %v1176, -inf
    %1203 = vmax.xlane.f32.xlu0 %v1202
    %v1204 = vpop.xlane.xlu0 %1203
    %v1205 = vsel %vm299, %v1177, -inf
    %1206 = vmax.xlane.f32.xlu0 %v1205
    %v1207 = vpop.xlane.xlu0 %1206
    %v1208 = vsub.f32 %v1168, %v1180
    %v1209 = vsub.f32 %v1169, %v1183
    %v1210 = vsub.f32 %v1170, %v1186
    %v1211 = vsub.f32 %v1171, %v1189
    %v1212 = vsub.f32 %v1172, %v1192
    %v1213 = vsub.f32 %v1173, %v1195
    %v1214 = vsub.f32 %v1174, %v1198
    %v1215 = vsub.f32 %v1175, %v1201
    %v1216 = vsub.f32 %v1176, %v1204
    %v1217 = vsub.f32 %v1177, %v1207
    %v1218 = vmul.f32 %v1208, 1.442695
    %v1219 = vpow.pop %v1218
    %v1220 = vmul.f32 %v1209, 1.442695
    %v1221 = vpow.pop %v1220
    %v1222 = vmul.f32 %v1210, 1.442695
    %v1223 = vpow.pop %v1222
    %v1224 = vmul.f32 %v1211, 1.442695
    %v1225 = vpow.pop %v1224
    %v1226 = vmul.f32 %v1212, 1.442695
    %v1227 = vpow.pop %v1226
    %v1228 = vmul.f32 %v1213, 1.442695
    %v1229 = vpow.pop %v1228
    %v1230 = vmul.f32 %v1214, 1.442695
    %v1231 = vpow.pop %v1230
    %v1232 = vmul.f32 %v1215, 1.442695
    %v1233 = vpow.pop %v1232
    %v1234 = vmul.f32 %v1216, 1.442695
    %v1235 = vpow.pop %v1234
    %v1236 = vmul.f32 %v1217, 1.442695
    %v1237 = vpow.pop %v1236
    %v1238 = vsel %vm271, %v1219, 0.0
    %1239 = vadd.xlane.f32.xlu0 %v1238
    %v1240 = vpop.xlane.xlu0 %1239
    %v1241 = vsel %vm271, %v1221, 0.0
    %1242 = vadd.xlane.f32.xlu0 %v1241
    %v1243 = vpop.xlane.xlu0 %1242
    %v1244 = vsel %vm271, %v1223, 0.0
    %1245 = vadd.xlane.f32.xlu0 %v1244
    %v1246 = vpop.xlane.xlu0 %1245
    %v1247 = vsel %vm271, %v1225, 0.0
    %1248 = vadd.xlane.f32.xlu0 %v1247
    %v1249 = vpop.xlane.xlu0 %1248
    %v1250 = vsel %vm271, %v1227, 0.0
    %1251 = vadd.xlane.f32.xlu0 %v1250
    %v1252 = vpop.xlane.xlu0 %1251
    %v1253 = vsel %vm271, %v1229, 0.0
    %1254 = vadd.xlane.f32.xlu0 %v1253
    %v1255 = vpop.xlane.xlu0 %1254
    %v1256 = vsel %vm271, %v1231, 0.0
    %1257 = vadd.xlane.f32.xlu0 %v1256
    %v1258 = vpop.xlane.xlu0 %1257
    %v1259 = vsel %vm271, %v1233, 0.0
    %1260 = vadd.xlane.f32.xlu0 %v1259
    %v1261 = vpop.xlane.xlu0 %1260
    %v1262 = vsel %vm271, %v1235, 0.0
    %1263 = vadd.xlane.f32.xlu0 %v1262
    %v1264 = vpop.xlane.xlu0 %1263
    %v1265 = vsel %vm299, %v1237, 0.0
    %1266 = vadd.xlane.f32.xlu0 %v1265
    %v1267 = vpop.xlane.xlu0 %1266
    %v1268 = vrcp.pop %v1240
    %v1269 = vrcp.pop %v1243
    %v1270 = vrcp.pop %v1246
    %v1271 = vrcp.pop %v1249
    %v1272 = vrcp.pop %v1252
    %v1273 = vrcp.pop %v1255
    %v1274 = vrcp.pop %v1258
    %v1275 = vrcp.pop %v1261
    %v1276 = vrcp.pop %v1264
    %v1277 = vrcp.pop %v1267
    %v1278 = vmul.f32 %v1219, %v1268
    %v1279 = vmul.f32 %v1221, %v1269
    %v1280 = vmul.f32 %v1223, %v1270
    %v1281 = vmul.f32 %v1225, %v1271
    %v1282 = vmul.f32 %v1227, %v1272
    %v1283 = vmul.f32 %v1229, %v1273
    %v1284 = vmul.f32 %v1231, %v1274
    %v1285 = vmul.f32 %v1233, %v1275
    %v1286 = vmul.f32 %v1235, %v1276
    %v1287 = vmul.f32 %v1237, %v1277
    %v1288 = vperm.slane %v1156, 0
    %v1289 = vmul.f32 %v1278, %v1288
    %v1290 = vmul.f32 %v1279, %v1288
    %v1291 = vmul.f32 %v1280, %v1288
    %v1292 = vmul.f32 %v1281, %v1288
    %v1293 = vmul.f32 %v1282, %v1288
    %v1294 = vmul.f32 %v1283, %v1288
    %v1295 = vmul.f32 %v1284, %v1288
    %v1296 = vmul.f32 %v1285, %v1288
    %v1297 = vmul.f32 %v1286, %v1288
    %v1298 = vmul.f32 %v1287, %v1288
    %v1299 = vsel %vm271, %v1289, 0.0
    %1300 = vadd.xlane.f32.xlu0 %v1299
    %v1301 = vpop.xlane.xlu0 %1300
    %v1302 = vsel %vm271, %v1290, 0.0
    %1303 = vadd.xlane.f32.xlu0 %v1302
    %v1304 = vpop.xlane.xlu0 %1303
    %v1305 = vsel %vm271, %v1291, 0.0
    %1306 = vadd.xlane.f32.xlu0 %v1305
    %v1307 = vpop.xlane.xlu0 %1306
    %v1308 = vsel %vm271, %v1292, 0.0
    %1309 = vadd.xlane.f32.xlu0 %v1308
    %v1310 = vpop.xlane.xlu0 %1309
    %v1311 = vsel %vm271, %v1293, 0.0
    %1312 = vadd.xlane.f32.xlu0 %v1311
    %v1313 = vpop.xlane.xlu0 %1312
    %v1314 = vsel %vm271, %v1294, 0.0
    %1315 = vadd.xlane.f32.xlu0 %v1314
    %v1316 = vpop.xlane.xlu0 %1315
    %v1317 = vsel %vm271, %v1295, 0.0
    %1318 = vadd.xlane.f32.xlu0 %v1317
    %v1319 = vpop.xlane.xlu0 %1318
    %v1320 = vsel %vm271, %v1296, 0.0
    %1321 = vadd.xlane.f32.xlu0 %v1320
    %v1322 = vpop.xlane.xlu0 %1321
    %v1323 = vsel %vm271, %v1297, 0.0
    %1324 = vadd.xlane.f32.xlu0 %v1323
    %v1325 = vpop.xlane.xlu0 %1324
    %v1326 = vsel %vm299, %v1298, 0.0
    %1327 = vadd.xlane.f32.xlu0 %v1326
    %v1328 = vpop.xlane.xlu0 %1327
    %v1329 = vstv %s1125
    %v1330 = vmul.f32 %v1329, %v274
    %v1331 = vmul.f32 %v1329, %v277
    %v1332 = vmul.f32 %v1329, %v280
    %v1333 = vmul.f32 %v1329, %v283
    %v1334 = vmul.f32 %v1329, %v286
    %v1335 = vmul.f32 %v1329, %v289
    %v1336 = vmul.f32 %v1329, %v292
    %v1337 = vmul.f32 %v1329, %v295
    %v1338 = vmul.f32 %v1329, %v298
    %v1339 = vmul.f32 %v1329, %v302
    %v1340 = vstv %s1126
    %v1341 = vadd.f32 %v1330, %v1340
    %v1342 = vadd.f32 %v1331, %v1340
    %v1343 = vadd.f32 %v1332, %v1340
    %v1344 = vadd.f32 %v1333, %v1340
    %v1345 = vadd.f32 %v1334, %v1340
    %v1346 = vadd.f32 %v1335, %v1340
    %v1347 = vadd.f32 %v1336, %v1340
    %v1348 = vadd.f32 %v1337, %v1340
    %v1349 = vadd.f32 %v1338, %v1340
    %v1350 = vadd.f32 %v1339, %v1340
    %v1351 = vadd.f32 %v1301, %v1341
    %v1352 = vadd.f32 %v1304, %v1342
    %v1353 = vadd.f32 %v1307, %v1343
    %v1354 = vadd.f32 %v1310, %v1344
    %v1355 = vadd.f32 %v1313, %v1345
    %v1356 = vadd.f32 %v1316, %v1346
    %v1357 = vadd.f32 %v1319, %v1347
    %v1358 = vadd.f32 %v1322, %v1348
    %v1359 = vadd.f32 %v1325, %v1349
    %v1360 = vadd.f32 %v1328, %v1350
    %vm1361 = vcmp.gt.f32.partialorder %v1351, 0.0
    %vm1362 = vcmp.gt.f32.partialorder %v1352, 0.0
    %vm1363 = vcmp.gt.f32.partialorder %v1353, 0.0
    %vm1364 = vcmp.gt.f32.partialorder %v1354, 0.0
    %vm1365 = vcmp.gt.f32.partialorder %v1355, 0.0
    %vm1366 = vcmp.gt.f32.partialorder %v1356, 0.0
    %vm1367 = vcmp.gt.f32.partialorder %v1357, 0.0
    %vm1368 = vcmp.gt.f32.partialorder %v1358, 0.0
    %vm1369 = vcmp.gt.f32.partialorder %v1359, 0.0
    %vm1370 = vcmp.gt.f32.partialorder %v1360, 0.0
    %v1371 = vmul.f32 %v1351, 0.01
    %v1372 = vmul.f32 %v1352, 0.01
    %v1373 = vmul.f32 %v1353, 0.01
    %v1374 = vmul.f32 %v1354, 0.01
    %v1375 = vmul.f32 %v1355, 0.01
    %v1376 = vmul.f32 %v1356, 0.01
    %v1377 = vmul.f32 %v1357, 0.01
    %v1378 = vmul.f32 %v1358, 0.01
    %v1379 = vmul.f32 %v1359, 0.01
    %v1380 = vmul.f32 %v1360, 0.01
    %v1381 = vsel %vm1361, %v1351, %v1371
    %v1382 = vsel %vm1362, %v1352, %v1372
    %v1383 = vsel %vm1363, %v1353, %v1373
    %v1384 = vsel %vm1364, %v1354, %v1374
    %v1385 = vsel %vm1365, %v1355, %v1375
    %v1386 = vsel %vm1366, %v1356, %v1376
    %v1387 = vsel %vm1367, %v1357, %v1377
    %v1388 = vsel %vm1368, %v1358, %v1378
    %v1389 = vsel %vm1369, %v1359, %v1379
    %v1390 = vsel %vm1370, %v1360, %v1380
    %s1391 = sld [smem:[#allocation2 + $0x30]]
    %s1392 = sld [smem:[#allocation2 + $0x31]]
    %s1393 = sld [smem:[#allocation2 + $0x32]]
    %s1394 = sld [smem:[#allocation2 + $0x33]]
    %s1395 = sld [smem:[#allocation2 + $0x20]]
    %v1396 = vstv %s1395
    %v1397 = vmul.f32 %v1396, %v565
    %v1398 = vmul.f32 %v1396, %v566
    %v1399 = vmul.f32 %v1396, %v567
    %v1400 = vmul.f32 %v1396, %v568
    %v1401 = vmul.f32 %v1396, %v569
    %v1402 = vmul.f32 %v1396, %v570
    %v1403 = vmul.f32 %v1396, %v571
    %v1404 = vmul.f32 %v1396, %v572
    %v1405 = vmul.f32 %v1396, %v573
    %v1406 = vmul.f32 %v1396, %v574
    %s1407 = sld [smem:[#allocation2 + $0x21]]
    %v1408 = vstv %s1407
    %v1409 = vmul.f32 %v1408, %v837
    %v1410 = vmul.f32 %v1408, %v838
    %v1411 = vmul.f32 %v1408, %v839
    %v1412 = vmul.f32 %v1408, %v840
    %v1413 = vmul.f32 %v1408, %v841
    %v1414 = vmul.f32 %v1408, %v842
    %v1415 = vmul.f32 %v1408, %v843
    %v1416 = vmul.f32 %v1408, %v844
    %v1417 = vmul.f32 %v1408, %v845
    %v1418 = vmul.f32 %v1408, %v846
    %v1419 = vadd.f32 %v1397, %v1409
    %v1420 = vadd.f32 %v1398, %v1410
    %v1421 = vadd.f32 %v1399, %v1411
    %v1422 = vadd.f32 %v1400, %v1412
    %v1423 = vadd.f32 %v1401, %v1413
    %v1424 = vadd.f32 %v1402, %v1414
    %v1425 = vadd.f32 %v1403, %v1415
    %v1426 = vadd.f32 %v1404, %v1416
    %v1427 = vadd.f32 %v1405, %v1417
    %v1428 = vadd.f32 %v1406, %v1418
    %s1429 = sld [smem:[#allocation2 + $0x22]]
    %v1430 = vstv %s1429
    %v1431 = vmul.f32 %v1430, %v1109
    %v1432 = vmul.f32 %v1430, %v1110
    %v1433 = vmul.f32 %v1430, %v1111
    %v1434 = vmul.f32 %v1430, %v1112
    %v1435 = vmul.f32 %v1430, %v1113
    %v1436 = vmul.f32 %v1430, %v1114
    %v1437 = vmul.f32 %v1430, %v1115
    %v1438 = vmul.f32 %v1430, %v1116
    %v1439 = vmul.f32 %v1430, %v1117
    %v1440 = vmul.f32 %v1430, %v1118
    %v1441 = vadd.f32 %v1419, %v1431
    %v1442 = vadd.f32 %v1420, %v1432
    %v1443 = vadd.f32 %v1421, %v1433
    %v1444 = vadd.f32 %v1422, %v1434
    %v1445 = vadd.f32 %v1423, %v1435
    %v1446 = vadd.f32 %v1424, %v1436
    %v1447 = vadd.f32 %v1425, %v1437
    %v1448 = vadd.f32 %v1426, %v1438
    %v1449 = vadd.f32 %v1427, %v1439
    %v1450 = vadd.f32 %v1428, %v1440
    %s1451 = sld [smem:[#allocation2 + $0x23]]
    %v1452 = vstv %s1451
    %v1453 = vmul.f32 %v1452, %v1381
    %v1454 = vmul.f32 %v1452, %v1382
    %v1455 = vmul.f32 %v1452, %v1383
    %v1456 = vmul.f32 %v1452, %v1384
    %v1457 = vmul.f32 %v1452, %v1385
    %v1458 = vmul.f32 %v1452, %v1386
    %v1459 = vmul.f32 %v1452, %v1387
    %v1460 = vmul.f32 %v1452, %v1388
    %v1461 = vmul.f32 %v1452, %v1389
    %v1462 = vmul.f32 %v1452, %v1390
    %v1463 = vadd.f32 %v1441, %v1453
    %v1464 = vadd.f32 %v1442, %v1454
    %v1465 = vadd.f32 %v1443, %v1455
    %v1466 = vadd.f32 %v1444, %v1456
    %v1467 = vadd.f32 %v1445, %v1457
    %v1468 = vadd.f32 %v1446, %v1458
    %v1469 = vadd.f32 %v1447, %v1459
    %v1470 = vadd.f32 %v1448, %v1460
    %v1471 = vadd.f32 %v1449, %v1461
    %v1472 = vadd.f32 %v1450, %v1462
    %v1473 = vstv %s1391
    %v1474 = vadd.f32 %v1463, %v1473
    %v1475 = vadd.f32 %v1464, %v1473
    %v1476 = vadd.f32 %v1465, %v1473
    %v1477 = vadd.f32 %v1466, %v1473
    %v1478 = vadd.f32 %v1467, %v1473
    %v1479 = vadd.f32 %v1468, %v1473
    %v1480 = vadd.f32 %v1469, %v1473
    %v1481 = vadd.f32 %v1470, %v1473
    %v1482 = vadd.f32 %v1471, %v1473
    %v1483 = vadd.f32 %v1472, %v1473
    %s1484 = sld [smem:[#allocation2 + $0x24]]
    %v1485 = vstv %s1484
    %v1486 = vmul.f32 %v1485, %v565
    %v1487 = vmul.f32 %v1485, %v566
    %v1488 = vmul.f32 %v1485, %v567
    %v1489 = vmul.f32 %v1485, %v568
    %v1490 = vmul.f32 %v1485, %v569
    %v1491 = vmul.f32 %v1485, %v570
    %v1492 = vmul.f32 %v1485, %v571
    %v1493 = vmul.f32 %v1485, %v572
    %v1494 = vmul.f32 %v1485, %v573
    %v1495 = vmul.f32 %v1485, %v574
    %s1496 = sld [smem:[#allocation2 + $0x25]]
    %v1497 = vstv %s1496
    %v1498 = vmul.f32 %v1497, %v837
    %v1499 = vmul.f32 %v1497, %v838
    %v1500 = vmul.f32 %v1497, %v839
    %v1501 = vmul.f32 %v1497, %v840
    %v1502 = vmul.f32 %v1497, %v841
    %v1503 = vmul.f32 %v1497, %v842
    %v1504 = vmul.f32 %v1497, %v843
    %v1505 = vmul.f32 %v1497, %v844
    %v1506 = vmul.f32 %v1497, %v845
    %v1507 = vmul.f32 %v1497, %v846
    %v1508 = vadd.f32 %v1486, %v1498
    %v1509 = vadd.f32 %v1487, %v1499
    %v1510 = vadd.f32 %v1488, %v1500
    %v1511 = vadd.f32 %v1489, %v1501
    %v1512 = vadd.f32 %v1490, %v1502
    %v1513 = vadd.f32 %v1491, %v1503
    %v1514 = vadd.f32 %v1492, %v1504
    %v1515 = vadd.f32 %v1493, %v1505
    %v1516 = vadd.f32 %v1494, %v1506
    %v1517 = vadd.f32 %v1495, %v1507
    %s1518 = sld [smem:[#allocation2 + $0x26]]
    %v1519 = vstv %s1518
    %v1520 = vmul.f32 %v1519, %v1109
    %v1521 = vmul.f32 %v1519, %v1110
    %v1522 = vmul.f32 %v1519, %v1111
    %v1523 = vmul.f32 %v1519, %v1112
    %v1524 = vmul.f32 %v1519, %v1113
    %v1525 = vmul.f32 %v1519, %v1114
    %v1526 = vmul.f32 %v1519, %v1115
    %v1527 = vmul.f32 %v1519, %v1116
    %v1528 = vmul.f32 %v1519, %v1117
    %v1529 = vmul.f32 %v1519, %v1118
    %v1530 = vadd.f32 %v1508, %v1520
    %v1531 = vadd.f32 %v1509, %v1521
    %v1532 = vadd.f32 %v1510, %v1522
    %v1533 = vadd.f32 %v1511, %v1523
    %v1534 = vadd.f32 %v1512, %v1524
    %v1535 = vadd.f32 %v1513, %v1525
    %v1536 = vadd.f32 %v1514, %v1526
    %v1537 = vadd.f32 %v1515, %v1527
    %v1538 = vadd.f32 %v1516, %v1528
    %v1539 = vadd.f32 %v1517, %v1529
    %s1540 = sld [smem:[#allocation2 + $0x27]]
    %v1541 = vstv %s1540
    %v1542 = vmul.f32 %v1541, %v1381
    %v1543 = vmul.f32 %v1541, %v1382
    %v1544 = vmul.f32 %v1541, %v1383
    %v1545 = vmul.f32 %v1541, %v1384
    %v1546 = vmul.f32 %v1541, %v1385
    %v1547 = vmul.f32 %v1541, %v1386
    %v1548 = vmul.f32 %v1541, %v1387
    %v1549 = vmul.f32 %v1541, %v1388
    %v1550 = vmul.f32 %v1541, %v1389
    %v1551 = vmul.f32 %v1541, %v1390
    %v1552 = vadd.f32 %v1530, %v1542
    %v1553 = vadd.f32 %v1531, %v1543
    %v1554 = vadd.f32 %v1532, %v1544
    %v1555 = vadd.f32 %v1533, %v1545
    %v1556 = vadd.f32 %v1534, %v1546
    %v1557 = vadd.f32 %v1535, %v1547
    %v1558 = vadd.f32 %v1536, %v1548
    %v1559 = vadd.f32 %v1537, %v1549
    %v1560 = vadd.f32 %v1538, %v1550
    %v1561 = vadd.f32 %v1539, %v1551
    %v1562 = vstv %s1392
    %v1563 = vadd.f32 %v1552, %v1562
    %v1564 = vadd.f32 %v1553, %v1562
    %v1565 = vadd.f32 %v1554, %v1562
    %v1566 = vadd.f32 %v1555, %v1562
    %v1567 = vadd.f32 %v1556, %v1562
    %v1568 = vadd.f32 %v1557, %v1562
    %v1569 = vadd.f32 %v1558, %v1562
    %v1570 = vadd.f32 %v1559, %v1562
    %v1571 = vadd.f32 %v1560, %v1562
    %v1572 = vadd.f32 %v1561, %v1562
    %s1573 = sld [smem:[#allocation2 + $0x28]]
    %v1574 = vstv %s1573
    %v1575 = vmul.f32 %v1574, %v565
    %v1576 = vmul.f32 %v1574, %v566
    %v1577 = vmul.f32 %v1574, %v567
    %v1578 = vmul.f32 %v1574, %v568
    %v1579 = vmul.f32 %v1574, %v569
    %v1580 = vmul.f32 %v1574, %v570
    %v1581 = vmul.f32 %v1574, %v571
    %v1582 = vmul.f32 %v1574, %v572
    %v1583 = vmul.f32 %v1574, %v573
    %v1584 = vmul.f32 %v1574, %v574
    %s1585 = sld [smem:[#allocation2 + $0x29]]
    %v1586 = vstv %s1585
    %v1587 = vmul.f32 %v1586, %v837
    %v1588 = vmul.f32 %v1586, %v838
    %v1589 = vmul.f32 %v1586, %v839
    %v1590 = vmul.f32 %v1586, %v840
    %v1591 = vmul.f32 %v1586, %v841
    %v1592 = vmul.f32 %v1586, %v842
    %v1593 = vmul.f32 %v1586, %v843
    %v1594 = vmul.f32 %v1586, %v844
    %v1595 = vmul.f32 %v1586, %v845
    %v1596 = vmul.f32 %v1586, %v846
    %v1597 = vadd.f32 %v1575, %v1587
    %v1598 = vadd.f32 %v1576, %v1588
    %v1599 = vadd.f32 %v1577, %v1589
    %v1600 = vadd.f32 %v1578, %v1590
    %v1601 = vadd.f32 %v1579, %v1591
    %v1602 = vadd.f32 %v1580, %v1592
    %v1603 = vadd.f32 %v1581, %v1593
    %v1604 = vadd.f32 %v1582, %v1594
    %v1605 = vadd.f32 %v1583, %v1595
    %v1606 = vadd.f32 %v1584, %v1596
    %s1607 = sld [smem:[#allocation2 + $0x2a]]
    %v1608 = vstv %s1607
    %v1609 = vmul.f32 %v1608, %v1109
    %v1610 = vmul.f32 %v1608, %v1110
    %v1611 = vmul.f32 %v1608, %v1111
    %v1612 = vmul.f32 %v1608, %v1112
    %v1613 = vmul.f32 %v1608, %v1113
    %v1614 = vmul.f32 %v1608, %v1114
    %v1615 = vmul.f32 %v1608, %v1115
    %v1616 = vmul.f32 %v1608, %v1116
    %v1617 = vmul.f32 %v1608, %v1117
    %v1618 = vmul.f32 %v1608, %v1118
    %v1619 = vadd.f32 %v1597, %v1609
    %v1620 = vadd.f32 %v1598, %v1610
    %v1621 = vadd.f32 %v1599, %v1611
    %v1622 = vadd.f32 %v1600, %v1612
    %v1623 = vadd.f32 %v1601, %v1613
    %v1624 = vadd.f32 %v1602, %v1614
    %v1625 = vadd.f32 %v1603, %v1615
    %v1626 = vadd.f32 %v1604, %v1616
    %v1627 = vadd.f32 %v1605, %v1617
    %v1628 = vadd.f32 %v1606, %v1618
    %s1629 = sld [smem:[#allocation2 + $0x2b]]
    %v1630 = vstv %s1629
    %v1631 = vmul.f32 %v1630, %v1381
    %v1632 = vmul.f32 %v1630, %v1382
    %v1633 = vmul.f32 %v1630, %v1383
    %v1634 = vmul.f32 %v1630, %v1384
    %v1635 = vmul.f32 %v1630, %v1385
    %v1636 = vmul.f32 %v1630, %v1386
    %v1637 = vmul.f32 %v1630, %v1387
    %v1638 = vmul.f32 %v1630, %v1388
    %v1639 = vmul.f32 %v1630, %v1389
    %v1640 = vmul.f32 %v1630, %v1390
    %v1641 = vadd.f32 %v1619, %v1631
    %v1642 = vadd.f32 %v1620, %v1632
    %v1643 = vadd.f32 %v1621, %v1633
    %v1644 = vadd.f32 %v1622, %v1634
    %v1645 = vadd.f32 %v1623, %v1635
    %v1646 = vadd.f32 %v1624, %v1636
    %v1647 = vadd.f32 %v1625, %v1637
    %v1648 = vadd.f32 %v1626, %v1638
    %v1649 = vadd.f32 %v1627, %v1639
    %v1650 = vadd.f32 %v1628, %v1640
    %v1651 = vstv %s1393
    %v1652 = vadd.f32 %v1641, %v1651
    %v1653 = vadd.f32 %v1642, %v1651
    %v1654 = vadd.f32 %v1643, %v1651
    %v1655 = vadd.f32 %v1644, %v1651
    %v1656 = vadd.f32 %v1645, %v1651
    %v1657 = vadd.f32 %v1646, %v1651
    %v1658 = vadd.f32 %v1647, %v1651
    %v1659 = vadd.f32 %v1648, %v1651
    %v1660 = vadd.f32 %v1649, %v1651
    %v1661 = vadd.f32 %v1650, %v1651
    %s1662 = sld [smem:[#allocation2 + $0x2c]]
    %v1663 = vstv %s1662
    %v1664 = vmul.f32 %v1663, %v565
    %v1665 = vmul.f32 %v1663, %v566
    %v1666 = vmul.f32 %v1663, %v567
    %v1667 = vmul.f32 %v1663, %v568
    %v1668 = vmul.f32 %v1663, %v569
    %v1669 = vmul.f32 %v1663, %v570
    %v1670 = vmul.f32 %v1663, %v571
    %v1671 = vmul.f32 %v1663, %v572
    %v1672 = vmul.f32 %v1663, %v573
    %v1673 = vmul.f32 %v1663, %v574
    %s1674 = sld [smem:[#allocation2 + $0x2d]]
    %v1675 = vstv %s1674
    %v1676 = vmul.f32 %v1675, %v837
    %v1677 = vmul.f32 %v1675, %v838
    %v1678 = vmul.f32 %v1675, %v839
    %v1679 = vmul.f32 %v1675, %v840
    %v1680 = vmul.f32 %v1675, %v841
    %v1681 = vmul.f32 %v1675, %v842
    %v1682 = vmul.f32 %v1675, %v843
    %v1683 = vmul.f32 %v1675, %v844
    %v1684 = vmul.f32 %v1675, %v845
    %v1685 = vmul.f32 %v1675, %v846
    %v1686 = vadd.f32 %v1664, %v1676
    %v1687 = vadd.f32 %v1665, %v1677
    %v1688 = vadd.f32 %v1666, %v1678
    %v1689 = vadd.f32 %v1667, %v1679
    %v1690 = vadd.f32 %v1668, %v1680
    %v1691 = vadd.f32 %v1669, %v1681
    %v1692 = vadd.f32 %v1670, %v1682
    %v1693 = vadd.f32 %v1671, %v1683
    %v1694 = vadd.f32 %v1672, %v1684
    %v1695 = vadd.f32 %v1673, %v1685
    %s1696 = sld [smem:[#allocation2 + $0x2e]]
    %v1697 = vstv %s1696
    %v1698 = vmul.f32 %v1697, %v1109
    %v1699 = vmul.f32 %v1697, %v1110
    %v1700 = vmul.f32 %v1697, %v1111
    %v1701 = vmul.f32 %v1697, %v1112
    %v1702 = vmul.f32 %v1697, %v1113
    %v1703 = vmul.f32 %v1697, %v1114
    %v1704 = vmul.f32 %v1697, %v1115
    %v1705 = vmul.f32 %v1697, %v1116
    %v1706 = vmul.f32 %v1697, %v1117
    %v1707 = vmul.f32 %v1697, %v1118
    %v1708 = vadd.f32 %v1686, %v1698
    %v1709 = vadd.f32 %v1687, %v1699
    %v1710 = vadd.f32 %v1688, %v1700
    %v1711 = vadd.f32 %v1689, %v1701
    %v1712 = vadd.f32 %v1690, %v1702
    %v1713 = vadd.f32 %v1691, %v1703
    %v1714 = vadd.f32 %v1692, %v1704
    %v1715 = vadd.f32 %v1693, %v1705
    %v1716 = vadd.f32 %v1694, %v1706
    %v1717 = vadd.f32 %v1695, %v1707
    %s1718 = sld [smem:[#allocation2 + $0x2f]]
    %v1719 = vstv %s1718
    %v1720 = vmul.f32 %v1719, %v1381
    %v1721 = vmul.f32 %v1719, %v1382
    %v1722 = vmul.f32 %v1719, %v1383
    %v1723 = vmul.f32 %v1719, %v1384
    %v1724 = vmul.f32 %v1719, %v1385
    %v1725 = vmul.f32 %v1719, %v1386
    %v1726 = vmul.f32 %v1719, %v1387
    %v1727 = vmul.f32 %v1719, %v1388
    %v1728 = vmul.f32 %v1719, %v1389
    %v1729 = vmul.f32 %v1719, %v1390
    %v1730 = vadd.f32 %v1708, %v1720
    %v1731 = vadd.f32 %v1709, %v1721
    %v1732 = vadd.f32 %v1710, %v1722
    %v1733 = vadd.f32 %v1711, %v1723
    %v1734 = vadd.f32 %v1712, %v1724
    %v1735 = vadd.f32 %v1713, %v1725
    %v1736 = vadd.f32 %v1714, %v1726
    %v1737 = vadd.f32 %v1715, %v1727
    %v1738 = vadd.f32 %v1716, %v1728
    %v1739 = vadd.f32 %v1717, %v1729
    %v1740 = vstv %s1394
    %v1741 = vadd.f32 %v1730, %v1740
    %v1742 = vadd.f32 %v1731, %v1740
    %v1743 = vadd.f32 %v1732, %v1740
    %v1744 = vadd.f32 %v1733, %v1740
    %v1745 = vadd.f32 %v1734, %v1740
    %v1746 = vadd.f32 %v1735, %v1740
    %v1747 = vadd.f32 %v1736, %v1740
    %v1748 = vadd.f32 %v1737, %v1740
    %v1749 = vadd.f32 %v1738, %v1740
    %v1750 = vadd.f32 %v1739, %v1740
    %v1751 = vmul.f32 %v61, %v1474
    %v1752 = vmul.f32 %v62, %v1475
    %v1753 = vmul.f32 %v63, %v1476
    %v1754 = vmul.f32 %v64, %v1477
    %v1755 = vmul.f32 %v65, %v1478
    %v1756 = vmul.f32 %v66, %v1479
    %v1757 = vmul.f32 %v67, %v1480
    %v1758 = vmul.f32 %v68, %v1481
    %v1759 = vmul.f32 %v69, %v1482
    %v1760 = vmul.f32 %v70, %v1483
    %v1761 = vsel %vm271, %v1751, 0.0
    %v1762 = vsel %vm271, %v1752, 0.0
    %v1763 = vadd.f32 %v1761, %v1762
    %v1764 = vsel %vm271, %v1753, 0.0
    %v1765 = vadd.f32 %v1763, %v1764
    %v1766 = vsel %vm271, %v1754, 0.0
    %v1767 = vadd.f32 %v1765, %v1766
    %v1768 = vsel %vm271, %v1755, 0.0
    %v1769 = vadd.f32 %v1767, %v1768
    %v1770 = vsel %vm271, %v1756, 0.0
    %v1771 = vadd.f32 %v1769, %v1770
    %v1772 = vsel %vm271, %v1757, 0.0
    %v1773 = vadd.f32 %v1771, %v1772
    %v1774 = vsel %vm271, %v1758, 0.0
    %v1775 = vadd.f32 %v1773, %v1774
    %v1776 = vsel %vm271, %v1759, 0.0
    %v1777 = vadd.f32 %v1775, %v1776
    %v1778 = vsel %vm299, %v1760, 0.0
    %v1779 = vadd.f32 %v1777, %v1778
    %v1780 = vrot.slane %v1779, 4
    %v1781 = vadd.f32 %v1779, %v1780
    %v1782 = vrot.slane %v1781, 2
    %v1783 = vadd.f32 %v1781, %v1782
    %v1784 = vrot.slane %v1783, 1
    %v1785 = vadd.f32 %v1783, %v1784
    %v1786 = vmul.f32 %v61, %v1741
    %v1787 = vmul.f32 %v62, %v1742
    %v1788 = vmul.f32 %v63, %v1743
    %v1789 = vmul.f32 %v64, %v1744
    %v1790 = vmul.f32 %v65, %v1745
    %v1791 = vmul.f32 %v66, %v1746
    %v1792 = vmul.f32 %v67, %v1747
    %v1793 = vmul.f32 %v68, %v1748
    %v1794 = vmul.f32 %v69, %v1749
    %v1795 = vmul.f32 %v70, %v1750
    %v1796 = vsel %vm271, %v1786, 0.0
    %v1797 = vsel %vm271, %v1787, 0.0
    %v1798 = vadd.f32 %v1796, %v1797
    %v1799 = vsel %vm271, %v1788, 0.0
    %v1800 = vadd.f32 %v1798, %v1799
    %v1801 = vsel %vm271, %v1789, 0.0
    %v1802 = vadd.f32 %v1800, %v1801
    %v1803 = vsel %vm271, %v1790, 0.0
    %v1804 = vadd.f32 %v1802, %v1803
    %v1805 = vsel %vm271, %v1791, 0.0
    %v1806 = vadd.f32 %v1804, %v1805
    %v1807 = vsel %vm271, %v1792, 0.0
    %v1808 = vadd.f32 %v1806, %v1807
    %v1809 = vsel %vm271, %v1793, 0.0
    %v1810 = vadd.f32 %v1808, %v1809
    %v1811 = vsel %vm271, %v1794, 0.0
    %v1812 = vadd.f32 %v1810, %v1811
    %v1813 = vsel %vm299, %v1795, 0.0
    %v1814 = vadd.f32 %v1812, %v1813
    %v1815 = vrot.slane %v1814, 4
    %v1816 = vadd.f32 %v1814, %v1815
    %v1817 = vrot.slane %v1816, 2
    %v1818 = vadd.f32 %v1816, %v1817
    %v1819 = vrot.slane %v1818, 1
    %v1820 = vadd.f32 %v1818, %v1819
    %v1821 = vmul.f32 %v1563, %v1785
    %v1822 = vmul.f32 %v1564, %v1785
    %v1823 = vmul.f32 %v1565, %v1785
    %v1824 = vmul.f32 %v1566, %v1785
    %v1825 = vmul.f32 %v1567, %v1785
    %v1826 = vmul.f32 %v1568, %v1785
    %v1827 = vmul.f32 %v1569, %v1785
    %v1828 = vmul.f32 %v1570, %v1785
    %v1829 = vmul.f32 %v1571, %v1785
    %v1830 = vmul.f32 %v1572, %v1785
    %v1831 = vadd.f32 %v1821, %v51
    %v1832 = vadd.f32 %v1822, %v52
    %v1833 = vadd.f32 %v1823, %v53
    %v1834 = vadd.f32 %v1824, %v54
    %v1835 = vadd.f32 %v1825, %v55
    %v1836 = vadd.f32 %v1826, %v56
    %v1837 = vadd.f32 %v1827, %v57
    %v1838 = vadd.f32 %v1828, %v58
    %v1839 = vadd.f32 %v1829, %v59
    %v1840 = vadd.f32 %v1830, %v60
    %v1841 = vsel %vm271, %v1831, -inf
    %v1842 = vsel %vm271, %v1832, -inf
    %v1843 = vsel %vm271, %v1833, -inf
    %v1844 = vsel %vm271, %v1834, -inf
    %v1845 = vsel %vm271, %v1835, -inf
    %v1846 = vmax.f32 %v1841, %v1845
    %v1847 = vsel %vm271, %v1836, -inf
    %v1848 = vmax.f32 %v1842, %v1847
    %v1849 = vsel %vm271, %v1837, -inf
    %v1850 = vmax.f32 %v1843, %v1849
    %v1851 = vsel %vm271, %v1838, -inf
    %v1852 = vmax.f32 %v1844, %v1851
    %v1853 = vsel %vm271, %v1839, -inf
    %v1854 = vmax.f32 %v1846, %v1853
    %v1855 = vsel %vm299, %v1840, -inf
    %v1856 = vmax.f32 %v1848, %v1855
    %v1857 = vmax.f32 %v1854, %v1856
    %v1858 = vmax.f32 %v1850, %v1852
    %v1859 = vmax.f32 %v1857, %v1858
    %v1860 = vrot.slane %v1859, 4
    %v1861 = vmax.f32 %v1859, %v1860
    %v1862 = vrot.slane %v1861, 2
    %v1863 = vmax.f32 %v1861, %v1862
    %v1864 = vrot.slane %v1863, 1
    %v1865 = vmax.f32 %v1863, %v1864
    %v1866 = vsub.f32 %v1831, %v1865
    %v1867 = vsub.f32 %v1832, %v1865
    %v1868 = vsub.f32 %v1833, %v1865
    %v1869 = vsub.f32 %v1834, %v1865
    %v1870 = vsub.f32 %v1835, %v1865
    %v1871 = vsub.f32 %v1836, %v1865
    %v1872 = vsub.f32 %v1837, %v1865
    %v1873 = vsub.f32 %v1838, %v1865
    %v1874 = vsub.f32 %v1839, %v1865
    %v1875 = vsub.f32 %v1840, %v1865
    %v1876 = vmul.f32 %v1866, 1.442695
    %v1877 = vpow.pop %v1876
    %v1878 = vmul.f32 %v1867, 1.442695
    %v1879 = vpow.pop %v1878
    %v1880 = vmul.f32 %v1868, 1.442695
    %v1881 = vpow.pop %v1880
    %v1882 = vmul.f32 %v1869, 1.442695
    %v1883 = vpow.pop %v1882
    %v1884 = vmul.f32 %v1870, 1.442695
    %v1885 = vpow.pop %v1884
    %v1886 = vmul.f32 %v1871, 1.442695
    %v1887 = vpow.pop %v1886
    %v1888 = vmul.f32 %v1872, 1.442695
    %v1889 = vpow.pop %v1888
    %v1890 = vmul.f32 %v1873, 1.442695
    %v1891 = vpow.pop %v1890
    %v1892 = vmul.f32 %v1874, 1.442695
    %v1893 = vpow.pop %v1892
    %v1894 = vmul.f32 %v1875, 1.442695
    %v1895 = vpow.pop %v1894
    %v1896 = vsel %vm271, %v1877, 0.0
    %v1897 = vsel %vm271, %v1879, 0.0
    %v1898 = vadd.f32 %v1896, %v1897
    %v1899 = vsel %vm271, %v1881, 0.0
    %v1900 = vadd.f32 %v1898, %v1899
    %v1901 = vsel %vm271, %v1883, 0.0
    %v1902 = vadd.f32 %v1900, %v1901
    %v1903 = vsel %vm271, %v1885, 0.0
    %v1904 = vadd.f32 %v1902, %v1903
    %v1905 = vsel %vm271, %v1887, 0.0
    %v1906 = vadd.f32 %v1904, %v1905
    %v1907 = vsel %vm271, %v1889, 0.0
    %v1908 = vadd.f32 %v1906, %v1907
    %v1909 = vsel %vm271, %v1891, 0.0
    %v1910 = vadd.f32 %v1908, %v1909
    %v1911 = vsel %vm271, %v1893, 0.0
    %v1912 = vadd.f32 %v1910, %v1911
    %v1913 = vsel %vm299, %v1895, 0.0
    %v1914 = vadd.f32 %v1912, %v1913
    %v1915 = vrot.slane %v1914, 4
    %v1916 = vadd.f32 %v1914, %v1915
    %v1917 = vrot.slane %v1916, 2
    %v1918 = vadd.f32 %v1916, %v1917
    %v1919 = vrot.slane %v1918, 1
    %v1920 = vadd.f32 %v1918, %v1919
    %v1921 = vrcp.pop %v1920
    %v1922 = vmul.f32 %v1877, %v1921
    %v1923 = vmul.f32 %v1879, %v1921
    %v1924 = vmul.f32 %v1881, %v1921
    %v1925 = vmul.f32 %v1883, %v1921
    %v1926 = vmul.f32 %v1885, %v1921
    %v1927 = vmul.f32 %v1887, %v1921
    %v1928 = vmul.f32 %v1889, %v1921
    %v1929 = vmul.f32 %v1891, %v1921
    %v1930 = vmul.f32 %v1893, %v1921
    %v1931 = vmul.f32 %v1895, %v1921
    %v1932 = vmul.f32 %v1922, %v1652
    %v1933 = vmul.f32 %v1923, %v1653
    %v1934 = vmul.f32 %v1924, %v1654
    %v1935 = vmul.f32 %v1925, %v1655
    %v1936 = vmul.f32 %v1926, %v1656
    %v1937 = vmul.f32 %v1927, %v1657
    %v1938 = vmul.f32 %v1928, %v1658
    %v1939 = vmul.f32 %v1929, %v1659
    %v1940 = vmul.f32 %v1930, %v1660
    %v1941 = vmul.f32 %v1931, %v1661
    %v1942 = vsel %vm271, %v1932, 0.0
    %v1943 = vsel %vm271, %v1933, 0.0
    %v1944 = vadd.f32 %v1942, %v1943
    %v1945 = vsel %vm271, %v1934, 0.0
    %v1946 = vadd.f32 %v1944, %v1945
    %v1947 = vsel %vm271, %v1935, 0.0
    %v1948 = vadd.f32 %v1946, %v1947
    %v1949 = vsel %vm271, %v1936, 0.0
    %v1950 = vadd.f32 %v1948, %v1949
    %v1951 = vsel %vm271, %v1937, 0.0
    %v1952 = vadd.f32 %v1950, %v1951
    %v1953 = vsel %vm271, %v1938, 0.0
    %v1954 = vadd.f32 %v1952, %v1953
    %v1955 = vsel %vm271, %v1939, 0.0
    %v1956 = vadd.f32 %v1954, %v1955
    %v1957 = vsel %vm271, %v1940, 0.0
    %v1958 = vadd.f32 %v1956, %v1957
    %v1959 = vsel %vm299, %v1941, 0.0
    %v1960 = vadd.f32 %v1958, %v1959
    %v1961 = vrot.slane %v1960, 4
    %v1962 = vadd.f32 %v1960, %v1961
    %v1963 = vrot.slane %v1962, 2
    %v1964 = vadd.f32 %v1962, %v1963
    %v1965 = vrot.slane %v1964, 1
    %v1966 = vadd.f32 %v1964, %v1965
    %v1967 = vadd.f32 %v1966, %v1820
    %vm1968 = vcmp.gt.f32.partialorder %v1967, 0.0
    %v1969 = vmul.f32 %v1967, 0.01
    %v1970 = vsel %vm1968, %v1967, %v1969
    %v1971 = vsel %vm271, %v1970, 0.0
    %1972 = vadd.xlane.f32.xlu0 %v1971
    %v1973 = vpop.xlane.xlu0 %1972
    %v1974 = vrcp.pop 78.0
    %v1975 = vmul.f32 78.0, %v1974
    %v1976 = vsub.f32 1.0, %v1975
    %v1977 = vmul.f32 %v1974, %v1976
    %v1978 = vadd.f32 %v1974, %v1977
    %vm1979 = vweird.f32 %v1974
    %v1980 = vsel %vm1979, %v1974, %v1978
    %v1981 = vmul.f32 %v1973, %v1980
    %v1982 = vsub.f32 %v1970, %v1981
    %v1983 = vmul.f32 %v1982, %v1982
    %v1984 = vsel %vm271, %v1983, 0.0
    %1985 = vadd.xlane.f32.xlu0 %v1984
    %v1986 = vpop.xlane.xlu0 %1985
    %v1987 = vmul.f32 %v1986, %v1980
    %v1988 = vadd.f32 %v1987, 1e-05
    %v1989 = vrsqrt.pop %v1988
    %v1990 = vmul.f32 %v1989, %v1988
    %v1991 = vmul.f32 %v1990, %v1989
    %v1992 = vmul.f32 0.5, %v1991
    %v1993 = vsub.f32 1.5, %v1992
    %v1994 = vmul.f32 %v1989, %v1993
    %vm1995 = vweird.f32 %v1988
    %vm1996 = vweird.f32 %v1989
    %vm1997 = vmor %vm1995, %vm1996
    %v1998 = vsel %vm1997, %v1989, %v1994
    %v1999 = vmul.f32 %v1982, %v1998
    %v2000 = vmul.f32 %v1999, %v38
    %v2001 = vadd.f32 %v2000, %v39
    %v2003 = vsel %vm271, %v2001, 0
    %vm2005 = vcmask 1045504
    %v2007 = vsel %vm2005, %v80, 0
    %2009 = vmatpush.msra.mxu0 0.0
    %2010 = vmatpush.msra.mxu0 0.0
    %2011 = vmatpush.msra.mxu0 0.0
    %2012 = vmatpush.msra.mxu0 0.0
    %2013 = vmatpush.msra.mxu0 0.0
    %2014 = vmatpush.msra.mxu0 0.0
    %2015 = vmatpush.msra.mxu0 %v2007
    %2016 = vmatpush.msra.mxu0 %v79
    %2017 = vmatpush.msra.mxu0 %v78
    %2018 = vmatpush.msra.mxu0 %v77
    %2019 = vmatpush.msra.mxu0 %v76
    %2020 = vmatpush.msra.mxu0 %v75
    %2021 = vmatpush.msra.mxu0 %v74
    %2022 = vmatpush.msra.mxu0 %v73
    %2023 = vmatpush.msra.mxu0 %v72
    %2024 = vmatpush.msra.mxu0 %v71
    %2025 = vmatmul.f32.gmra.mxu0 %v2003
    %v2026 = vpop.f32.mrf.mxu0
    %v2027 = vadd.f32 %v40, %v2026
    %2028 = vdwg.mxu0
    %vm2029 = vcmask 8192
    %2030 = vst.msk [vmem:[#allocation5] sm:$0x1] %vm2029, %v2027
    // Predicated region
    $region22: #{graph_test_forward.1} parent=1 // pred_check
      _
    $region23: #{graph_test_forward.1} parent=1 // pred_check_branch
      %2032 = sbr.rel (0) target = $region25
    $region24: #{graph_test_forward.1} parent=1 // pred_region
      %2034 = vsyncadd [#allocation3], 0
      %s2036 = sshll.u32 [#allocation5], 4
      %s2037 = int_to_ptr.vmem [resolvable:$true] %s2036
      %s2038 = sshll.u32 %s4, 4
      %s2039 = int_to_ptr.hbm [resolvable:$true] %s2038
      %2041 = dma.vmem_to_hbm [thread:$0]  %s2037, 16, %s2039, [#allocation3]
    $region25: #{graph_test_forward.1} parent=1 // pred_fallthru
      _
    // Predicated region
    $region26: #{graph_test_forward.1} parent=1 // pred_check
      _
    $region27: #{graph_test_forward.1} parent=1 // pred_check_branch
      %2043 = sbr.rel (0) target = $region29
    $region28: #{graph_test_forward.1} parent=1 // pred_region
      %2045 = dma.done [#allocation3], 16
    $region29: #{graph_test_forward.1} parent=1 // pred_fallthru
      _
    %2046 = vsyncpa [#allocation3], 1
    %2047 = vsyncpa [#allocation4], 1

</llo_original>
